<compile_context>
chip_gen: v5e
topology: v5e:2x2
jax: 0.10.0
libtpu: 0.0.40
codegen_flags: <defaults>
</compile_context>

<pallas_src>
import jax
import jax.numpy as jnp
from jax.experimental import pallas as pl
from jax.experimental.pallas import tpu as pltpu


def _round_up(v, m):
    return (v + m - 1) // m * m


# ---------------------------------------------------------------------------
# Fused kernel
#   grid = (node_tiles [parallel], node_types [arbitrary], edge_blocks [arbitrary])
# ---------------------------------------------------------------------------
def _make_fused_kernel(num_node_tiles, append_self):
    def kernel(bs_ref,      # SMEM [T*NT] int32: first edge block of bucket (t, n)
               cnt_ref,     # SMEM [T*NT] int32: number of edge blocks in bucket (t, n)
               x_ref,       # [n_tile, D]       output-node features (compute dtype)
               tgt_ref,     # [e_tile, 1] int32 absolute target index (sentinel=N_pad)
               pmsg_ref,    # [e_tile, H]       pre-message: x_in[nbr]@Wn + attrs@We + b
               wt_ref,      # [D, H]            message weight for x[target]
               wum_ref,     # [H, OUT_pad]      W_u slice for this type's message block
               *rest):
        if append_self:
            wus_ref = rest[0]   # [D, OUT_pad] W_u slice for the appended self block
            rest = rest[1:]
        bu_ref, out_ref, a_sc, msg_acc, o_acc = rest

        n_i = pl.program_id(0)
        t_i = pl.program_id(1)
        e_i = pl.program_id(2)
        n_types = pl.num_programs(1)
        n_eblk = pl.num_programs(2)
        n_tile = x_ref.shape[0]
        e_tile = tgt_ref.shape[0]
        cdt = x_ref.dtype

        # ---- once per node tile: seed the fused-update accumulator ------------
        @pl.when((t_i == 0) & (e_i == 0))
        def _():
            if append_self:
                o_acc[...] = (jnp.dot(x_ref[...], wus_ref[...],
                                      preferred_element_type=jnp.float32)
                              + bu_ref[...])
            else:
                o_acc[...] = jnp.broadcast_to(bu_ref[...], o_acc.shape)

        # ---- once per (node tile, type): hoist x@Wt, reset message accumulator
        @pl.when(e_i == 0)
        def _():
            a_sc[...] = jnp.dot(x_ref[...], wt_ref[...],
                                preferred_element_type=jnp.float32).astype(cdt)
            msg_acc[...] = jnp.zeros_like(msg_acc)

        # ---- per edge block of this bucket (skipped when beyond the bucket) ----
        cnt = cnt_ref[t_i * num_node_tiles + n_i]

        @pl.when(e_i < cnt)
        def _():
            node_base = n_i * n_tile
            tgt_rel = tgt_ref[...] - node_base                    # [e_tile, 1]
            lane = jax.lax.broadcasted_iota(jnp.int32, (e_tile, n_tile), 1)
            one = jnp.ones((), dtype=cdt)
            zero = jnp.zeros((), dtype=cdt)
            g = jnp.where(tgt_rel == lane, one, zero)             # [e_tile, n_tile]
            # gather fused with the hoisted weight matmul: g @ (x@Wt) == x[tgt]@Wt
            pre = (jnp.dot(g, a_sc[...], preferred_element_type=jnp.float32)
                   + pmsg_ref[...].astype(jnp.float32))           # [e_tile, H]
            msg = jnp.maximum(pre, 0.0).astype(cdt)
            # scatter-sum onto this node tile with the SAME mask (transposed lhs);
            # rows whose target is padded / outside this tile have an all-zero
            # mask column and therefore contribute nothing.
            msg_acc[...] += jax.lax.dot_general(
                g, msg, (((0,), (0,)), ((), ())),
                preferred_element_type=jnp.float32)               # [n_tile, H]

        # ---- per (node tile, type): fold messages into the update matmul -------
        @pl.when(e_i == n_eblk - 1)
        def _():
            o_acc[...] += jnp.dot(msg_acc[...].astype(cdt), wum_ref[...],
                                  preferred_element_type=jnp.float32)

        # ---- last type + last edge block: activation + lane-dense store --------
        @pl.when((t_i == n_types - 1) & (e_i == n_eblk - 1))
        def _():
            out_ref[...] = jnp.maximum(o_acc[...], 0.0).astype(out_ref.dtype)

    return kernel


# ---------------------------------------------------------------------------
# NodeTypeModel (JAX/Pallas) — single fused pallas_call
# ---------------------------------------------------------------------------
class NodeTypeModelPallas:
    def __init__(self, message_params, update_params, node_type, node_types,
                 append_self=False, compute_dtype=jnp.bfloat16,
                 out_dtype=jnp.float32, node_tile=256, edge_tile=1024):
        self.message_params = message_params
        self.update_params = update_params
        self.node_type = node_type
        self.node_types = list(node_types)
        self.node_type_ix = self.node_types.index(node_type)
        self.append_self = append_self
        self.compute_dtype = compute_dtype
        self.out_dtype = out_dtype
        # v6e (128 MiB VMEM) tolerates node_tile=512 / edge_tile=2048; these
        # defaults stay conservative so v7x (64 MiB) never spills.
        self.node_tile = node_tile      # multiple of 8
        self.edge_tile = edge_tile      # multiple of 128 (lane-dim of the edge blocks)

    def __call__(self, x, xs, edge_indexs, edge_attrs):
        cdt = self.compute_dtype
        node_types = self.node_types
        T = len(node_types)
        N, D = x.shape
        H = self.message_params[node_types[0]][0].shape[1]
        w_u, b_u = self.update_params
        OUT = w_u.shape[1]
        assert w_u.shape[0] == T * H + (D if self.append_self else 0)

        # ---- tile geometry ----------------------------------------------------
        N8 = _round_up(N, 8)
        n_tile = min(self.node_tile, N8)
        # v7x megacore: prefer >= 2 node tiles so the "parallel" axis really splits.
        if N8 // n_tile < 2 and N8 >= 16:
            n_tile = _round_up(N8 // 2, 8)
        N_pad = _round_up(N8, n_tile)
        NT = N_pad // n_tile

        E_max = max(int(edge_indexs[t].shape[1]) for t in node_types)
        e_tile = min(self.edge_tile, _round_up(max(E_max, 1), 8))
        E_pad = _round_up(max(E_max, 1), e_tile)
        OUT_pad = _round_up(OUT, 128)           # lane-dense (unmasked) output stores

        # ---- per-type preprocessing (XLA): sort by target + pre-messages --------
        # Sorting by target node lets each node tile visit only its own edge blocks
        # (scalar-prefetched block offsets / counts).  The n-invariant per-edge term
        # x_in[nbr] @ Wn + attrs @ We + b is computed once here instead of once per
        # node tile in the kernel.
        tgt_list, pmsg_list, bs_list, cnt_list = [], [], [], []
        lowers = jnp.arange(NT, dtype=jnp.int32) * n_tile
        uppers = lowers + n_tile
        for i, tpe in enumerate(node_types):
            wt, wn, we, bm = self.message_params[tpe]
            ei = jnp.asarray(edge_indexs[tpe], dtype=jnp.int32)
            if i < self.node_type_ix:
                ei = ei[::-1]                          # == edge_indices[[1, 0]]
            nbr, tgt = ei[0], ei[1]                    # row0 -> x_in, row1 -> x (target)
            order = jnp.argsort(tgt)
            tgt_s = tgt[order]
            nbr_s = nbr[order]
            attr_s = jnp.asarray(edge_attrs[tpe], jnp.float32)[order]
            x_in = jnp.asarray(xs[tpe], jnp.float32)
            pmsg = (x_in[nbr_s] @ wn + attr_s @ we + bm).astype(cdt)     # [E_t, H]
            e_n = int(tgt_s.shape[0])
            tgt_list.append(jnp.pad(tgt_s, (0, E_pad - e_n),
                                    constant_values=N_pad))              # sentinel
            pmsg_list.append(jnp.pad(pmsg, ((0, E_pad - e_n), (0, 0))))
            lo = jnp.searchsorted(tgt_s, lowers)
            hi = jnp.searchsorted(tgt_s, uppers)
            blk_start = lo // e_tile
            blk_end = (hi + e_tile - 1) // e_tile
            has = hi > lo
            bs_list.append(jnp.where(has, blk_start, 0).astype(jnp.int32))
            cnt_list.append(jnp.where(has, blk_end - blk_start, 0).astype(jnp.int32))

        tgt_stack = jnp.stack(tgt_list)[:, :, None]                # [T, E_pad, 1]
        pmsg_stack = jnp.stack(pmsg_list)                          # [T, E_pad, H]
        bs_all = jnp.stack(bs_list).reshape(-1)                    # [T*NT] (t*NT + n)
        cnt_all = jnp.stack(cnt_list).reshape(-1)

        try:
            e_blk_max = max(1, int(jnp.max(cnt_all)))
        except jax.errors.ConcretizationTypeError:
            # TODO(synk): under jit the real bucket max is unavailable; fall back to
            #             the static worst case (loses the bucketing win, stays correct).
            e_blk_max = max(1, E_pad // e_tile)

        wt_stack = jnp.stack([self.message_params[t][0] for t in node_types]).astype(cdt)
        wum_stack = jnp.stack([w_u[i * H:(i + 1) * H] for i in range(T)])  # [T, H, OUT]
        wum_stack = jnp.pad(wum_stack, ((0, 0), (0, 0), (0, OUT_pad - OUT))).astype(cdt)
        if self.append_self:
            wus_pad = jnp.pad(w_u[T * H:T * H + D],
                              ((0, 0), (0, OUT_pad - OUT))).astype(cdt)
        bu_pad = jnp.pad(b_u.reshape(1, OUT), ((0, 0), (0, OUT_pad - OUT))
                         ).astype(jnp.float32)
        x_pad = jnp.pad(x, ((0, N_pad - N), (0, 0))).astype(cdt)

        # ---- grid / specs -------------------------------------------------------
        def _edge_block(n, t, e, bs_ref, cnt_ref):
            c = cnt_ref[t * NT + n]
            off = jnp.where(c > 0, jnp.minimum(e, c - 1), 0)   # clamp -> no re-DMA
            return bs_ref[t * NT + n] + off

        in_specs = [
            pl.BlockSpec((n_tile, D), lambda n, t, e, bs, cnt: (n, 0)),          # x
            pl.BlockSpec((None, e_tile, 1),
                         lambda n, t, e, bs, cnt: (t, _edge_block(n, t, e, bs, cnt), 0)),
            pl.BlockSpec((None, e_tile, H),
                         lambda n, t, e, bs, cnt: (t, _edge_block(n, t, e, bs, cnt), 0)),
            pl.BlockSpec((None, D, H), lambda n, t, e, bs, cnt: (t, 0, 0)),      # Wt
            pl.BlockSpec((None, H, OUT_pad), lambda n, t, e, bs, cnt: (t, 0, 0)),  # W_u[type]
        ]
        call_args = [bs_all, cnt_all, x_pad, tgt_stack, pmsg_stack, wt_stack, wum_stack]
        if self.append_self:
            in_specs.append(pl.BlockSpec((D, OUT_pad), lambda n, t, e, bs, cnt: (0, 0)))
            call_args.append(wus_pad)
        in_specs.append(pl.BlockSpec((1, OUT_pad), lambda n, t, e, bs, cnt: (0, 0)))
        call_args.append(bu_pad)

        scratch_shapes = [
            pltpu.VMEM((n_tile, H), cdt),                # a_sc  = x_tile @ Wt
            pltpu.VMEM((n_tile, H), jnp.float32),        # msg_acc (per type)
            pltpu.VMEM((n_tile, OUT_pad), jnp.float32),  # o_acc (fused update)
        ]

        # ---- advisory cost + VMEM budget ---------------------------------------
        cb = jnp.dtype(cdt).itemsize
        ob = jnp.dtype(self.out_dtype).itemsize
        flops = (NT * T * e_blk_max * 4 * e_tile * n_tile * H
                 + NT * T * 2 * n_tile * (D * H + H * OUT_pad))
        if self.append_self:
            flops += NT * 2 * n_tile * D * OUT_pad
        bytes_accessed = (N_pad * D * cb
                          + NT * T * e_blk_max * e_tile * (4 + H * cb)
                          + T * (D * H + H * OUT_pad) * cb
                          + (D * OUT_pad * cb if self.append_self else 0)
                          + OUT_pad * 4
                          + N_pad * OUT_pad * ob)
        cost = pl.CostEstimate(flops=int(flops), transcendentals=0,
                               bytes_accessed=int(bytes_accessed))

        try:
            vmem_cap = int(pltpu.get_tpu_info().vmem_capacity_bytes)
        except Exception:
            vmem_cap = 128 * 1024 * 1024
        vmem_limit = int(min(96 * 2 ** 20, max(32 * 2 ** 20, vmem_cap // 2)))

        out = pl.pallas_call(
            _make_fused_kernel(NT, self.append_self),
            out_shape=jax.ShapeDtypeStruct((N_pad, OUT_pad), self.out_dtype),
            grid_spec=pltpu.PrefetchScalarGridSpec(
                num_scalar_prefetch=2,
                grid=(NT, T, e_blk_max),
                in_specs=in_specs,
                out_specs=pl.BlockSpec((n_tile, OUT_pad),
                                       lambda n, t, e, bs, cnt: (n, 0)),
                scratch_shapes=scratch_shapes),
            compiler_params=pltpu.CompilerParams(
                dimension_semantics=("parallel", "arbitrary", "arbitrary"),
                vmem_limit_bytes=vmem_limit),
            cost_estimate=cost,
        )(*call_args)

        return out[:N, :OUT]


# ---------------------------------------------------------------------------
# Pure-JAX reference (f32) for correctness check
# ---------------------------------------------------------------------------
def ref_forward(x, xs, edge_indexs, edge_attrs, msg_params, upd_params,
                node_types, node_type_ix, append_self):
    messages = []
    for i, tpe in enumerate(node_types):
        ei = edge_indexs[tpe]
        if i < node_type_ix:
            ei = ei[::-1]
        wt, wn, we, b = msg_params[tpe]
        x_in = xs[tpe]
        feat = jnp.maximum(x[ei[1]] @ wt + x_in[ei[0]] @ wn
                           + edge_attrs[tpe] @ we + b, 0.0)
        messages.append(jax.ops.segment_sum(feat, ei[1], num_segments=x.shape[0]))
    if append_self:
        messages.append(x)
    inp = jnp.concatenate(messages, axis=1)
    w_u, b_u = upd_params
    return jnp.maximum(inp @ w_u + b_u, 0.0)


if __name__ == "__main__":
    key = jax.random.PRNGKey(0)
    ks = jax.random.split(key, 20)

    node_types = ["det", "track"]
    node_type = "track"                 # node_type_ix == 1 -> "det" edges get swapped
    N_track, N_det = 10, 12
    D, De, H = 32, 16, 32               # node feat, edge-attr feat, message hidden
    E_det, E_track = 200, 150           # enough edges to span multiple edge blocks
    OUT = 24                            # update output (padded to 128 lanes in-kernel)

    # ---- inputs ----
    x = jax.random.normal(ks[0], (N_track, D), jnp.float32)
    xs = {"det": jax.random.normal(ks[1], (N_det, D), jnp.float32), "track": x}
    # stored "det" edges: row 0 indexes x (track), row 1 indexes x_in (det); the model
    # swaps them because "det" precedes "track" in node_types.
    edge_indexs = {
        "det": jnp.stack([jax.random.randint(ks[2], (E_det,), 0, N_track),
                          jax.random.randint(ks[3], (E_det,), 0, N_det)]).astype(jnp.int32),
        "track": jnp.stack([jax.random.randint(ks[4], (E_track,), 0, N_track),
                            jax.random.randint(ks[5], (E_track,), 0, N_track)]).astype(jnp.int32),
    }
    edge_attrs = {
        "det": jax.random.normal(ks[6], (E_det, De), jnp.float32),
        "track": jax.random.normal(ks[7], (E_track, De), jnp.float32),
    }

    # ---- deterministic synthetic parameters ----
    def msg_params(k0, k1, k2, k3):
        return (0.1 * jax.random.normal(k0, (D, H), jnp.float32),   # W for x[target]
                0.1 * jax.random.normal(k1, (D, H), jnp.float32),   # W for x_in[neighbor]
                0.1 * jax.random.normal(k2, (De, H), jnp.float32),  # W for edge attrs
                0.1 * jax.random.normal(k3, (1, H), jnp.float32))   # bias

    message_params = {
        "det": msg_params(ks[8], ks[9], ks[10], ks[11]),
        "track": msg_params(ks[12], ks[13], ks[14], ks[15]),
    }
    append_self = True
    cat_dim = H * len(node_types) + D                                # 96
    update_params = (0.1 * jax.random.normal(ks[16], (cat_dim, OUT), jnp.float32),
                     0.1 * jax.random.normal(ks[17], (1, OUT), jnp.float32))

    ref = ref_forward(x, xs, edge_indexs, edge_attrs, message_params,
                      update_params, node_types, node_types.index(node_type),
                      append_self)

    # --- f32 compute, default tiles (single edge block per type) ---
    m1 = NodeTypeModelPallas(message_params, update_params, node_type, node_types,
                             append_self=True, compute_dtype=jnp.float32)
    o1 = jax.block_until_ready(m1(x, xs, edge_indexs, edge_attrs))
    assert o1.shape == (N_track, OUT)
    assert jnp.allclose(o1, ref, atol=5e-3, rtol=5e-3)

    # --- f32 compute, small tiles: 2 node tiles x 2 edge blocks per type, so the
    #     scalar-prefetch bucket offsets/counts, clamping and pl.when skip paths
    #     are all genuinely exercised ---
    m2 = NodeTypeModelPallas(message_params, update_params, node_type, node_types,
                             append_self=True, compute_dtype=jnp.float32,
                             node_tile=8, edge_tile=128)
    o2 = jax.block_until_ready(m2(x, xs, edge_indexs, edge_attrs))
    assert jnp.allclose(o2, ref, atol=5e-3, rtol=5e-3)

    # --- bf16 compute path (default, MXU-native): looser tolerance ---
    m3 = NodeTypeModelPallas(message_params, update_params, node_type, node_types,
                             append_self=True, compute_dtype=jnp.bfloat16)
    o3 = jax.block_until_ready(m3(x, xs, edge_indexs, edge_attrs))
    assert o3.shape == (N_track, OUT)
    assert jnp.allclose(o3, ref, atol=0.5, rtol=0.1)

    # --- append_self=False static branch (no self matmul emitted) ---
    upd_ns = (0.1 * jax.random.normal(ks[18], (H * len(node_types), OUT), jnp.float32),
              0.1 * jax.random.normal(ks[19], (1, OUT), jnp.float32))
    ref_ns = ref_forward(x, xs, edge_indexs, edge_attrs, message_params, upd_ns,
                         node_types, node_types.index(node_type), False)
    m4 = NodeTypeModelPallas(message_params, upd_ns, node_type, node_types,
                             append_self=False, compute_dtype=jnp.float32)
    o4 = jax.block_until_ready(m4(x, xs, edge_indexs, edge_attrs))
    assert jnp.allclose(o4, ref_ns, atol=5e-3, rtol=5e-3)

    print("KERNEL_OK")
</pallas_src>

<mosaic_0001>
module attributes {stable_mosaic.version = 11 : i64} {
  func.func @kernel(%arg0: i32, %arg1: i32, %arg2: i32, %arg3: memref<4xi32, #tpu.memory_space<smem>>, %arg4: memref<4xi32, #tpu.memory_space<smem>>, %arg5: memref<8x32xf32, #tpu.memory_space<vmem>>, %arg6: memref<1x200x1xi32, #tpu.memory_space<vmem>>, %arg7: memref<1x200x32xf32, #tpu.memory_space<vmem>>, %arg8: memref<1x32x32xf32, #tpu.memory_space<vmem>>, %arg9: memref<1x32x128xf32, #tpu.memory_space<vmem>>, %arg10: memref<32x128xf32, #tpu.memory_space<vmem>>, %arg11: memref<1x128xf32, #tpu.memory_space<vmem>>, %arg12: memref<8x128xf32, #tpu.memory_space<vmem>>, %arg13: memref<8x32xf32, #tpu.memory_space<vmem>>, %arg14: memref<8x32xf32, #tpu.memory_space<vmem>>, %arg15: memref<8x128xf32, #tpu.memory_space<vmem>>) attributes {dimension_semantics = [#tpu.dimension_semantics<parallel>, #tpu.dimension_semantics<arbitrary>, #tpu.dimension_semantics<arbitrary>], iteration_bounds = array<i64: 2, 2, 1>, scalar_prefetch = 2 : i64, scratch_operands = 3 : i64, tpu.core_type = #tpu.core_type<tc>, window_params = [{transform_indices = @transform_0, window_bounds = array<i64: 8, 32>}, {transform_indices = @transform_1, window_bounds = array<i64: 1, 200, 1>}, {transform_indices = @transform_2, window_bounds = array<i64: 1, 200, 32>}, {transform_indices = @transform_3, window_bounds = array<i64: 1, 32, 32>}, {transform_indices = @transform_4, window_bounds = array<i64: 1, 32, 128>}, {pipeline_mode = #tpu.pipeline_mode<synchronous>, transform_indices = @transform_5, window_bounds = array<i64: 32, 128>}, {pipeline_mode = #tpu.pipeline_mode<synchronous>, transform_indices = @transform_6, window_bounds = array<i64: 1, 128>}, {transform_indices = @transform_7, window_bounds = array<i64: 8, 128>}]} {
    %c0_i32 = arith.constant 0 : i32
    %0 = arith.cmpi eq, %arg1, %c0_i32 : i32
    %c0_i32_0 = arith.constant 0 : i32
    %1 = arith.cmpi eq, %arg2, %c0_i32_0 : i32
    %2 = arith.andi %0, %1 : i1
    %3 = arith.extui %2 : i1 to i32
    %c0_i32_1 = arith.constant 0 : i32
    %4 = arith.cmpi ne, %3, %c0_i32_1 : i32
    scf.if %4 {
      %c0 = arith.constant 0 : index
      %c0_9 = arith.constant 0 : index
      %23 = vector.load %arg5[%c0, %c0_9] : memref<8x32xf32, #tpu.memory_space<vmem>>, vector<8x32xf32>
      %c0_10 = arith.constant 0 : index
      %c0_11 = arith.constant 0 : index
      %24 = vector.load %arg10[%c0_10, %c0_11] : memref<32x128xf32, #tpu.memory_space<vmem>>, vector<32x128xf32>
      %cst = arith.constant dense<0.000000e+00> : vector<8x128xf32>
      %25 = tpu.matmul %23, %24, %cst {dimension_numbers = #tpu.dot_dimension_numbers<[1], [0], [0], [1], [0, 0, 1, 1], [], []>} : vector<8x32xf32>, vector<32x128xf32>, vector<8x128xf32> -> vector<8x128xf32>
      %c0_12 = arith.constant 0 : index
      %c0_13 = arith.constant 0 : index
      %26 = vector.load %arg11[%c0_12, %c0_13] : memref<1x128xf32, #tpu.memory_space<vmem>>, vector<1x128xf32>
      %27 = vector.broadcast %26 : vector<1x128xf32> to vector<8x128xf32>
      %28 = arith.addf %25, %27 : vector<8x128xf32>
      %c0_14 = arith.constant 0 : index
      %c0_15 = arith.constant 0 : index
      %29 = vector.load %arg15[%c0_14, %c0_15] : memref<8x128xf32, #tpu.memory_space<vmem>>, vector<8x128xf32>
      tpu.vector_store %arg15[%c0_14, %c0_15], %28 {strides = array<i32>} : memref<8x128xf32, #tpu.memory_space<vmem>>, vector<8x128xf32>,
    } else {
    }
    %c0_i32_2 = arith.constant 0 : i32
    %5 = arith.cmpi eq, %arg2, %c0_i32_2 : i32
    %6 = arith.extui %5 : i1 to i32
    %c0_i32_3 = arith.constant 0 : i32
    %7 = arith.cmpi ne, %6, %c0_i32_3 : i32
    scf.if %7 {
      %c0 = arith.constant 0 : index
      %c0_9 = arith.constant 0 : index
      %23 = vector.load %arg5[%c0, %c0_9] : memref<8x32xf32, #tpu.memory_space<vmem>>, vector<8x32xf32>
      %c0_10 = arith.constant 0 : index
      %c0_11 = arith.constant 0 : index
      %c0_12 = arith.constant 0 : index
      %24 = vector.load %arg8[%c0_10, %c0_11, %c0_12] : memref<1x32x32xf32, #tpu.memory_space<vmem>>, vector<1x32x32xf32>
      %25 = vector.shape_cast %24 : vector<1x32x32xf32> to vector<32x32xf32>
      %cst = arith.constant dense<0.000000e+00> : vector<8x32xf32>
      %26 = tpu.matmul %23, %25, %cst {dimension_numbers = #tpu.dot_dimension_numbers<[1], [0], [0], [1], [0, 0, 1, 1], [], []>} : vector<8x32xf32>, vector<32x32xf32>, vector<8x32xf32> -> vector<8x32xf32>
      %c0_13 = arith.constant 0 : index
      %c0_14 = arith.constant 0 : index
      %27 = vector.load %arg13[%c0_13, %c0_14] : memref<8x32xf32, #tpu.memory_space<vmem>>, vector<8x32xf32>
      tpu.vector_store %arg13[%c0_13, %c0_14], %26 {strides = array<i32>} : memref<8x32xf32, #tpu.memory_space<vmem>>, vector<8x32xf32>,
      %cst_15 = arith.constant 0.000000e+00 : f32
      %28 = vector.broadcast %cst_15 : f32 to vector<8x32xf32>
      %c0_16 = arith.constant 0 : index
      %c0_17 = arith.constant 0 : index
      %29 = vector.load %arg14[%c0_16, %c0_17] : memref<8x32xf32, #tpu.memory_space<vmem>>, vector<8x32xf32>
      tpu.vector_store %arg14[%c0_16, %c0_17], %28 {strides = array<i32>} : memref<8x32xf32, #tpu.memory_space<vmem>>, vector<8x32xf32>,
    } else {
    }
    %c2_i32 = arith.constant 2 : i32
    %8 = arith.muli %arg1, %c2_i32 : i32
    %9 = arith.addi %8, %arg0 : i32
    %10 = arith.index_cast %9 : i32 to index
    %11 = memref.load %arg4[%10] : memref<4xi32, #tpu.memory_space<smem>>
    %12 = arith.cmpi slt, %arg2, %11 : i32
    %13 = arith.extui %12 : i1 to i32
    %c0_i32_4 = arith.constant 0 : i32
    %14 = arith.cmpi ne, %13, %c0_i32_4 : i32
    scf.if %14 {
      %c8_i32 = arith.constant 8 : i32
      %23 = arith.muli %arg0, %c8_i32 : i32
      %c0 = arith.constant 0 : index
      %c0_9 = arith.constant 0 : index
      %c0_10 = arith.constant 0 : index
      %24 = vector.load %arg6[%c0, %c0_9, %c0_10] : memref<1x200x1xi32, #tpu.memory_space<vmem>>, vector<1x200x1xi32>
      %25 = vector.shape_cast %24 : vector<1x200x1xi32> to vector<200x1xi32>
      %26 = vector.broadcast %23 : i32 to vector<200x1xi32>
      %27 = arith.subi %25, %26 : vector<200x1xi32>
      %28 = tpu.iota {dimensions = array<i32: 1>} : vector<200x8xi32>
      %29 = vector.broadcast %27 : vector<200x1xi32> to vector<200x8xi32>
      %30 = arith.cmpi eq, %29, %28 : vector<200x8xi32>
      %cst = arith.constant 1.000000e+00 : f32
      %cst_11 = arith.constant 0.000000e+00 : f32
      %31 = vector.broadcast %cst : f32 to vector<200x8xf32>
      %32 = vector.broadcast %cst_11 : f32 to vector<200x8xf32>
      %33 = arith.select %30, %31, %32 : vector<200x8xi1>, vector<200x8xf32>
      %c0_12 = arith.constant 0 : index
      %c0_13 = arith.constant 0 : index
      %34 = vector.load %arg13[%c0_12, %c0_13] : memref<8x32xf32, #tpu.memory_space<vmem>>, vector<8x32xf32>
      %cst_14 = arith.constant dense<0.000000e+00> : vector<200x32xf32>
      %35 = tpu.matmul %33, %34, %cst_14 {dimension_numbers = #tpu.dot_dimension_numbers<[1], [0], [0], [1], [0, 0, 1, 1], [], []>} : vector<200x8xf32>, vector<8x32xf32>, vector<200x32xf32> -> vector<200x32xf32>
      %c0_15 = arith.constant 0 : index
      %c0_16 = arith.constant 0 : index
      %c0_17 = arith.constant 0 : index
      %36 = vector.load %arg7[%c0_15, %c0_16, %c0_17] : memref<1x200x32xf32, #tpu.memory_space<vmem>>, vector<1x200x32xf32>
      %37 = vector.shape_cast %36 : vector<1x200x32xf32> to vector<200x32xf32>
      %38 = arith.addf %35, %37 : vector<200x32xf32>
      %cst_18 = arith.constant 0.000000e+00 : f32
      %39 = vector.broadcast %cst_18 : f32 to vector<200x32xf32>
      %40 = arith.maximumf %38, %39 : vector<200x32xf32>
      %c0_19 = arith.constant 0 : index
      %c0_20 = arith.constant 0 : index
      %41 = vector.load %arg14[%c0_19, %c0_20] : memref<8x32xf32, #tpu.memory_space<vmem>>, vector<8x32xf32>
      %cst_21 = arith.constant dense<0.000000e+00> : vector<8x32xf32>
      %42 = tpu.matmul %33, %40, %cst_21 {dimension_numbers = #tpu.dot_dimension_numbers<[0], [0], [1], [1], [0, 1, 1, 1], [], []>} : vector<200x8xf32>, vector<200x32xf32>, vector<8x32xf32> -> vector<8x32xf32>
      %43 = arith.addf %41, %42 : vector<8x32xf32>
      %c0_22 = arith.constant 0 : index
      %c0_23 = arith.constant 0 : index
      %44 = vector.load %arg14[%c0_22, %c0_23] : memref<8x32xf32, #tpu.memory_space<vmem>>, vector<8x32xf32>
      tpu.vector_store %arg14[%c0_22, %c0_23], %43 {strides = array<i32>} : memref<8x32xf32, #tpu.memory_space<vmem>>, vector<8x32xf32>,
    } else {
    }
    %c0_i32_5 = arith.constant 0 : i32
    %15 = arith.cmpi eq, %arg2, %c0_i32_5 : i32
    %16 = arith.extui %15 : i1 to i32
    %c0_i32_6 = arith.constant 0 : i32
    %17 = arith.cmpi ne, %16, %c0_i32_6 : i32
    scf.if %17 {
      %c0 = arith.constant 0 : index
      %c0_9 = arith.constant 0 : index
      %23 = vector.load %arg15[%c0, %c0_9] : memref<8x128xf32, #tpu.memory_space<vmem>>, vector<8x128xf32>
      %c0_10 = arith.constant 0 : index
      %c0_11 = arith.constant 0 : index
      %24 = vector.load %arg14[%c0_10, %c0_11] : memref<8x32xf32, #tpu.memory_space<vmem>>, vector<8x32xf32>
      %c0_12 = arith.constant 0 : index
      %c0_13 = arith.constant 0 : index
      %c0_14 = arith.constant 0 : index
      %25 = vector.load %arg9[%c0_12, %c0_13, %c0_14] : memref<1x32x128xf32, #tpu.memory_space<vmem>>, vector<1x32x128xf32>
      %26 = vector.shape_cast %25 : vector<1x32x128xf32> to vector<32x128xf32>
      %cst = arith.constant dense<0.000000e+00> : vector<8x128xf32>
      %27 = tpu.matmul %24, %26, %cst {dimension_numbers = #tpu.dot_dimension_numbers<[1], [0], [0], [1], [0, 0, 1, 1], [], []>} : vector<8x32xf32>, vector<32x128xf32>, vector<8x128xf32> -> vector<8x128xf32>
      %28 = arith.addf %23, %27 : vector<8x128xf32>
      %c0_15 = arith.constant 0 : index
      %c0_16 = arith.constant 0 : index
      %29 = vector.load %arg15[%c0_15, %c0_16] : memref<8x128xf32, #tpu.memory_space<vmem>>, vector<8x128xf32>
      tpu.vector_store %arg15[%c0_15, %c0_16], %28 {strides = array<i32>} : memref<8x128xf32, #tpu.memory_space<vmem>>, vector<8x128xf32>,
    } else {
    }
    %c1_i32 = arith.constant 1 : i32
    %18 = arith.cmpi eq, %arg1, %c1_i32 : i32
    %c0_i32_7 = arith.constant 0 : i32
    %19 = arith.cmpi eq, %arg2, %c0_i32_7 : i32
    %20 = arith.andi %18, %19 : i1
    %21 = arith.extui %20 : i1 to i32
    %c0_i32_8 = arith.constant 0 : i32
    %22 = arith.cmpi ne, %21, %c0_i32_8 : i32
    scf.if %22 {
      %c0 = arith.constant 0 : index
      %c0_9 = arith.constant 0 : index
      %23 = vector.load %arg15[%c0, %c0_9] : memref<8x128xf32, #tpu.memory_space<vmem>>, vector<8x128xf32>
      %cst = arith.constant 0.000000e+00 : f32
      %24 = vector.broadcast %cst : f32 to vector<8x128xf32>
      %25 = arith.maximumf %23, %24 : vector<8x128xf32>
      %c0_10 = arith.constant 0 : index
      %c0_11 = arith.constant 0 : index
      %26 = vector.load %arg12[%c0_10, %c0_11] : memref<8x128xf32, #tpu.memory_space<vmem>>, vector<8x128xf32>
      tpu.vector_store %arg12[%c0_10, %c0_11], %25 {strides = array<i32>} : memref<8x128xf32, #tpu.memory_space<vmem>>, vector<8x128xf32>,
    } else {
    }
    return
  }
  func.func @transform_0(%arg0: i32, %arg1: i32, %arg2: i32, %arg3: memref<4xi32, #tpu.memory_space<smem>>, %arg4: memref<4xi32, #tpu.memory_space<smem>>) -> (i32, i32) {
    %c0_i32 = arith.constant 0 : i32
    %c0_i32_0 = arith.constant 0 : i32
    return %arg0, %c0_i32 : i32, i32
  }
  func.func @transform_1(%arg0: i32, %arg1: i32, %arg2: i32, %arg3: memref<4xi32, #tpu.memory_space<smem>>, %arg4: memref<4xi32, #tpu.memory_space<smem>>) -> (i32, i32, i32) {
    %c2_i32 = arith.constant 2 : i32
    %0 = arith.muli %arg1, %c2_i32 : i32
    %1 = arith.addi %0, %arg0 : i32
    %2 = arith.index_cast %1 : i32 to index
    %3 = memref.load %arg4[%2] : memref<4xi32, #tpu.memory_space<smem>>
    %c0_i32 = arith.constant 0 : i32
    %4 = arith.cmpi sgt, %3, %c0_i32 : i32
    %c1_i32 = arith.constant 1 : i32
    %5 = arith.subi %3, %c1_i32 : i32
    %6 = arith.minsi %arg2, %5 : i32
    %c0_i32_0 = arith.constant 0 : i32
    %7 = arith.select %4, %6, %c0_i32_0 : i32
    %c2_i32_1 = arith.constant 2 : i32
    %8 = arith.muli %arg1, %c2_i32_1 : i32
    %9 = arith.addi %8, %arg0 : i32
    %10 = arith.index_cast %9 : i32 to index
    %11 = memref.load %arg3[%10] : memref<4xi32, #tpu.memory_space<smem>>
    %12 = arith.addi %11, %7 : i32
    %c0_i32_2 = arith.constant 0 : i32
    %c0_i32_3 = arith.constant 0 : i32
    return %arg1, %12, %c0_i32_2 : i32, i32, i32
  }
  func.func @transform_2(%arg0: i32, %arg1: i32, %arg2: i32, %arg3: memref<4xi32, #tpu.memory_space<smem>>, %arg4: memref<4xi32, #tpu.memory_space<smem>>) -> (i32, i32, i32) {
    %c2_i32 = arith.constant 2 : i32
    %0 = arith.muli %arg1, %c2_i32 : i32
    %1 = arith.addi %0, %arg0 : i32
    %2 = arith.index_cast %1 : i32 to index
    %3 = memref.load %arg4[%2] : memref<4xi32, #tpu.memory_space<smem>>
    %c0_i32 = arith.constant 0 : i32
    %4 = arith.cmpi sgt, %3, %c0_i32 : i32
    %c1_i32 = arith.constant 1 : i32
    %5 = arith.subi %3, %c1_i32 : i32
    %6 = arith.minsi %arg2, %5 : i32
    %c0_i32_0 = arith.constant 0 : i32
    %7 = arith.select %4, %6, %c0_i32_0 : i32
    %c2_i32_1 = arith.constant 2 : i32
    %8 = arith.muli %arg1, %c2_i32_1 : i32
    %9 = arith.addi %8, %arg0 : i32
    %10 = arith.index_cast %9 : i32 to index
    %11 = memref.load %arg3[%10] : memref<4xi32, #tpu.memory_space<smem>>
    %12 = arith.addi %11, %7 : i32
    %c0_i32_2 = arith.constant 0 : i32
    %c0_i32_3 = arith.constant 0 : i32
    return %arg1, %12, %c0_i32_2 : i32, i32, i32
  }
  func.func @transform_3(%arg0: i32, %arg1: i32, %arg2: i32, %arg3: memref<4xi32, #tpu.memory_space<smem>>, %arg4: memref<4xi32, #tpu.memory_space<smem>>) -> (i32, i32, i32) {
    %c0_i32 = arith.constant 0 : i32
    %c0_i32_0 = arith.constant 0 : i32
    %c0_i32_1 = arith.constant 0 : i32
    return %arg1, %c0_i32, %c0_i32_0 : i32, i32, i32
  }
  func.func @transform_4(%arg0: i32, %arg1: i32, %arg2: i32, %arg3: memref<4xi32, #tpu.memory_space<smem>>, %arg4: memref<4xi32, #tpu.memory_space<smem>>) -> (i32, i32, i32) {
    %c0_i32 = arith.constant 0 : i32
    %c0_i32_0 = arith.constant 0 : i32
    %c0_i32_1 = arith.constant 0 : i32
    return %arg1, %c0_i32, %c0_i32_0 : i32, i32, i32
  }
  func.func @transform_5(%arg0: i32, %arg1: i32, %arg2: i32, %arg3: memref<4xi32, #tpu.memory_space<smem>>, %arg4: memref<4xi32, #tpu.memory_space<smem>>) -> (i32, i32) {
    %c0_i32 = arith.constant 0 : i32
    %c0_i32_0 = arith.constant 0 : i32
    %c0_i32_1 = arith.constant 0 : i32
    return %c0_i32, %c0_i32_0 : i32, i32
  }
  func.func @transform_6(%arg0: i32, %arg1: i32, %arg2: i32, %arg3: memref<4xi32, #tpu.memory_space<smem>>, %arg4: memref<4xi32, #tpu.memory_space<smem>>) -> (i32, i32) {
    %c0_i32 = arith.constant 0 : i32
    %c0_i32_0 = arith.constant 0 : i32
    %c0_i32_1 = arith.constant 0 : i32
    return %c0_i32, %c0_i32_0 : i32, i32
  }
  func.func @transform_7(%arg0: i32, %arg1: i32, %arg2: i32, %arg3: memref<4xi32, #tpu.memory_space<smem>>, %arg4: memref<4xi32, #tpu.memory_space<smem>>) -> (i32, i32) {
    %c0_i32 = arith.constant 0 : i32
    %c0_i32_0 = arith.constant 0 : i32
    return %arg0, %c0_i32 : i32, i32
  }
}

</mosaic_0001>

<llo_original>
// kernel: tpu_custom_call.1
$region0: #{tpu_custom_call.1}
  #allocation0 [shape = 'u32[]', space=smem, size = 0x4, offset = 0x4, fixed_abs, tag = 'smem constant byte address 0x4 - core index']
  #allocation1 [shape = 'u32[72,128]{1,0:T(1,128)}', space=vmem, size = 0x9000, scoped, tag = 'internal scratch']
  #allocation2 [shape = 'f32[8,32]{1,0:T(8,128)}', space=vmem, size = 0x1000, scoped, tag = 'scratch operand']
  #allocation3 [shape = 'f32[8,32]{1,0:T(8,128)}', space=vmem, size = 0x1000, scoped, tag = 'scratch operand']
  #allocation4 [shape = 'f32[8,128]{1,0:T(8,128)}', space=vmem, size = 0x1000, scoped, tag = 'scratch operand']
  #allocation5 [shape = 's32[1]{0}', space=sflag, size = 0x4, scoped, tag = 'scoped memory for tpu_custom_call.1']
  #allocation6 [shape = 'u8[512]{0}', space=smem, size = 0x200, scoped, tag = 'prefetched SMEM operand 0']
  #allocation7 [shape = 'u8[512]{0}', space=smem, size = 0x200, scoped, tag = 'prefetched SMEM operand 1']
  %s0 = inlined_call_operand.vmem [shape: s32[4], index: 0, kind: input, shape index: {}]
  %s1 = inlined_call_operand.vmem [shape: s32[4], index: 1, kind: input, shape index: {}]
  %s2 = inlined_call_operand.vmem [shape: f32[16,32], index: 2, kind: input, shape index: {}]
  %s3 = inlined_call_operand.vmem [shape: s32[2,200,1], index: 3, kind: input, shape index: {}]
  %s4 = inlined_call_operand.vmem [shape: f32[2,200,32], index: 4, kind: input, shape index: {}]
  %s5 = inlined_call_operand.vmem [shape: f32[2,32,32], index: 5, kind: input, shape index: {}]
  %s6 = inlined_call_operand.vmem [shape: f32[2,32,128], index: 6, kind: input, shape index: {}]
  %s7 = inlined_call_operand.vmem [shape: f32[32,128], index: 7, kind: input, shape index: {}]
  %s8 = inlined_call_operand.vmem [shape: f32[1,128], index: 8, kind: input, shape index: {}]
  %s9 = inlined_call_operand.hbm [shape: f32[16,128], index: 9, kind: output, shape index: {}]
  %s10 = sld [smem:[#allocation0]]
  $region81: #{tpu_custom_call.1} parent=0
    _
  %s12 = ssub.s32 1, %s10
  %s13 = scalar_select 0, %s12, %s10
  %s15 = sshll.u32 %s0, 4
  %s16 = int_to_ptr.vmem [resolvable:$true] %s15
  %18 = dma.vmem_to_smem %s16, 16, [#allocation6], [#allocation5]
  %s20 = sshll.u32 %s1, 4
  %s21 = int_to_ptr.vmem [resolvable:$true] %s20
  %23 = dma.vmem_to_smem %s21, 16, [#allocation7], [#allocation5]
  %25 = dma.done [#allocation5], 32
  %26 = sfence
  $region1: #{tpu_custom_call.1} parent=0
    #allocation8 [shape = 'u8[8192]{0}', space=vmem, size = 0x2000, scoped, tag = 'output window, operand 0']
    #allocation9 [shape = 's32[2]{0}', space=sflag, size = 0x8, scoped, tag = 'scoped memory for tpu_custom_call.1']
    %27 = vsyncpa [#allocation9], 0
    %s28 = scalar_lea.sflag [#allocation9], 1
    %29 = vsyncpa %s28, 0
    loop: start=0, step=1, limit=6
    $region2: #{tpu_custom_call.1} parent=1 // loop_pre_header
      _
    $region3: #{tpu_custom_call.1} parent=1 // loop_header
      %s31 = sphi 0, %s35
      %p32 = scmp.ge.s32.totalorder %s31, 6
      %s38 = sphi 0, %s57
      %s39 = sphi 0, %s53
      %s40 = sphi 0, %s49
      %s41 = sphi 0, %s38
      %s42 = sphi 0, %s39
      %s43 = sphi 0, %s40
      %s44 = sphi 0, %s41
      %s45 = sphi 0, %s42
      %s46 = sphi 0, %s43
      %s60 = sphi 0, %s62
      %s63 = sphi 0, %s60
      %s64 = sphi 0, %s63
      %s80 = sphi 0, %s64
      %s108 = sphi 0, %s110
      %s111 = sphi 0, %s108
      %s112 = sphi 0, %s111
      %s128 = sphi 0, %s112
      %s156 = sphi 0, %s158
      %s159 = sphi 0, %s156
      %s160 = sphi 0, %s159
      %s176 = sphi 0, %s160
      %s182 = sphi 0, %s184
      %s185 = sphi 0, %s182
      %s186 = sphi 0, %s185
      %s202 = sphi 0, %s186
      %s208 = sphi 0, %s210
      %s211 = sphi 0, %s208
      %s212 = sphi 0, %s211
      %s228 = sphi 0, %s212
      %s232 = sphi 0, %s232
      %s234 = sphi 0, %s232
      %s235 = sphi 0, %s234
      %s249 = sphi 0, %s235
      %s253 = sphi 0, %s253
      %s255 = sphi 0, %s253
      %s256 = sphi 0, %s255
      %s270 = sphi 0, %s256
      %s276 = sphi 0, %s278
      %s279 = sphi 0, %s276
      %s280 = sphi 0, %s279
      %s296 = sphi 0, %s280
    $region4: #{tpu_custom_call.1} parent=1 // loop_header_branch
      %34 = sbr.rel (%p32) target = $region8
    $region5: #{tpu_custom_call.1} parent=1 // loop_body
      %s36 = ssub.s32 %s31, 1
      %s37 = ssub.s32 %s31, 2
      %s47 = sadd.s32 1, %s40
      %p48 = scmp.ge.s32.totalorder %s47, 1
      %s49 = scalar_select %p48, 0, %s47
      %s50 = sadd.s32 1, %s39
      %s51 = scalar_select %p48, %s50, %s39
      %p52 = scmp.ge.s32.totalorder %s51, 2
      %s53 = scalar_select %p52, 0, %s51
      %s54 = sadd.s32 1, %s38
      %s55 = scalar_select %p52, %s54, %s38
      %p56 = scmp.ge.s32.totalorder %s55, 2
      %s57 = scalar_select %p56, 0, %s55
      %s58 = ssub.s32 %s38, %s57
      %p59 = scmp.eq.s32.totalorder %s58, 0
      %s61 = sadd.s32 %s60, 1
      %s62 = scalar_select %p59, %s60, %s61
      %p65 = pneg %p59
      %p66 = scmp.eq.s32.totalorder %s31, 3
      %p67 = por %p65, %p66
      %p68 = scmp.ne.s32.totalorder %s60, %s63
      %p69 = scmp.eq.s32.totalorder %s31, 0
      %p70 = por %p68, %p69
      %p71 = scmp.ne.s32.totalorder %s60, %s63
      %p72 = scmp.eq.s32.totalorder %s36, 3
      %p73 = por %p71, %p72
      %p74 = scmp.ne.s32.totalorder %s63, %s64
      %p75 = scmp.eq.s32.totalorder %s36, 0
      %p76 = por %p74, %p75
      %p77 = scmp.ne.s32.totalorder %s63, %s64
      %p78 = scmp.eq.s32.totalorder %s37, 3
      %p79 = por %p77, %p78
      %p81 = scmp.ne.s32.totalorder %s64, %s80
      %p82 = scmp.eq.s32.totalorder %s37, 0
      %p83 = por %p81, %p82
      %s84 = smul.u32 %s39, 2
      %s85 = sadd.s32 %s84, %s38
      %s86 = sld [smem:[#allocation7 + %s85]]
      %p87 = scmp.gt.s32.totalorder %s86, 0
      %s88 = ssub.s32 %s86, 1
      %p89 = scmp.lt.s32.totalorder %s40, %s88
      %s90 = scalar_select %p89, %s40, %s88
      %s91 = scalar_select %p87, %s90, 0
      %s92 = sld [smem:[#allocation6 + %s85]]
      %s93 = sadd.s32 %s92, %s91
      %s94 = smul.u32 %s53, 2
      %s95 = sadd.s32 %s94, %s57
      %s96 = sld [smem:[#allocation7 + %s95]]
      %p97 = scmp.gt.s32.totalorder %s96, 0
      %s98 = ssub.s32 %s96, 1
      %p99 = scmp.lt.s32.totalorder %s49, %s98
      %s100 = scalar_select %p99, %s49, %s98
      %s101 = scalar_select %p97, %s100, 0
      %s102 = sld [smem:[#allocation6 + %s95]]
      %s103 = sadd.s32 %s102, %s101
      %s104 = ssub.s32 %s39, %s53
      %s105 = ssub.s32 %s93, %s103
      %s106 = sor.u32 %s104, %s105
      %p107 = scmp.eq.s32.totalorder %s106, 0
      %s109 = sadd.s32 %s108, 1
      %s110 = scalar_select %p107, %s108, %s109
      %p113 = pneg %p107
      %p114 = scmp.eq.s32.totalorder %s31, 3
      %p115 = por %p113, %p114
      %p116 = scmp.ne.s32.totalorder %s108, %s111
      %p117 = scmp.eq.s32.totalorder %s31, 0
      %p118 = por %p116, %p117
      %p119 = scmp.ne.s32.totalorder %s108, %s111
      %p120 = scmp.eq.s32.totalorder %s36, 3
      %p121 = por %p119, %p120
      %p122 = scmp.ne.s32.totalorder %s111, %s112
      %p123 = scmp.eq.s32.totalorder %s36, 0
      %p124 = por %p122, %p123
      %p125 = scmp.ne.s32.totalorder %s111, %s112
      %p126 = scmp.eq.s32.totalorder %s37, 3
      %p127 = por %p125, %p126
      %p129 = scmp.ne.s32.totalorder %s112, %s128
      %p130 = scmp.eq.s32.totalorder %s37, 0
      %p131 = por %p129, %p130
      %s132 = smul.u32 %s39, 2
      %s133 = sadd.s32 %s132, %s38
      %s134 = sld [smem:[#allocation7 + %s133]]
      %p135 = scmp.gt.s32.totalorder %s134, 0
      %s136 = ssub.s32 %s134, 1
      %p137 = scmp.lt.s32.totalorder %s40, %s136
      %s138 = scalar_select %p137, %s40, %s136
      %s139 = scalar_select %p135, %s138, 0
      %s140 = sld [smem:[#allocation6 + %s133]]
      %s141 = sadd.s32 %s140, %s139
      %s142 = smul.u32 %s53, 2
      %s143 = sadd.s32 %s142, %s57
      %s144 = sld [smem:[#allocation7 + %s143]]
      %p145 = scmp.gt.s32.totalorder %s144, 0
      %s146 = ssub.s32 %s144, 1
      %p147 = scmp.lt.s32.totalorder %s49, %s146
      %s148 = scalar_select %p147, %s49, %s146
      %s149 = scalar_select %p145, %s148, 0
      %s150 = sld [smem:[#allocation6 + %s143]]
      %s151 = sadd.s32 %s150, %s149
      %s152 = ssub.s32 %s39, %s53
      %s153 = ssub.s32 %s141, %s151
      %s154 = sor.u32 %s152, %s153
      %p155 = scmp.eq.s32.totalorder %s154, 0
      %s157 = sadd.s32 %s156, 1
      %s158 = scalar_select %p155, %s156, %s157
      %p161 = pneg %p155
      %p162 = scmp.eq.s32.totalorder %s31, 3
      %p163 = por %p161, %p162
      %p164 = scmp.ne.s32.totalorder %s156, %s159
      %p165 = scmp.eq.s32.totalorder %s31, 0
      %p166 = por %p164, %p165
      %p167 = scmp.ne.s32.totalorder %s156, %s159
      %p168 = scmp.eq.s32.totalorder %s36, 3
      %p169 = por %p167, %p168
      %p170 = scmp.ne.s32.totalorder %s159, %s160
      %p171 = scmp.eq.s32.totalorder %s36, 0
      %p172 = por %p170, %p171
      %p173 = scmp.ne.s32.totalorder %s159, %s160
      %p174 = scmp.eq.s32.totalorder %s37, 3
      %p175 = por %p173, %p174
      %p177 = scmp.ne.s32.totalorder %s160, %s176
      %p178 = scmp.eq.s32.totalorder %s37, 0
      %p179 = por %p177, %p178
      %s180 = ssub.s32 %s39, %s53
      %p181 = scmp.eq.s32.totalorder %s180, 0
      %s183 = sadd.s32 %s182, 1
      %s184 = scalar_select %p181, %s182, %s183
      %p187 = pneg %p181
      %p188 = scmp.eq.s32.totalorder %s31, 3
      %p189 = por %p187, %p188
      %p190 = scmp.ne.s32.totalorder %s182, %s185
      %p191 = scmp.eq.s32.totalorder %s31, 0
      %p192 = por %p190, %p191
      %p193 = scmp.ne.s32.totalorder %s182, %s185
      %p194 = scmp.eq.s32.totalorder %s36, 3
      %p195 = por %p193, %p194
      %p196 = scmp.ne.s32.totalorder %s185, %s186
      %p197 = scmp.eq.s32.totalorder %s36, 0
      %p198 = por %p196, %p197
      %p199 = scmp.ne.s32.totalorder %s185, %s186
      %p200 = scmp.eq.s32.totalorder %s37, 3
      %p201 = por %p199, %p200
      %p203 = scmp.ne.s32.totalorder %s186, %s202
      %p204 = scmp.eq.s32.totalorder %s37, 0
      %p205 = por %p203, %p204
      %s206 = ssub.s32 %s39, %s53
      %p207 = scmp.eq.s32.totalorder %s206, 0
      %s209 = sadd.s32 %s208, 1
      %s210 = scalar_select %p207, %s208, %s209
      %p213 = pneg %p207
      %p214 = scmp.eq.s32.totalorder %s31, 3
      %p215 = por %p213, %p214
      %p216 = scmp.ne.s32.totalorder %s208, %s211
      %p217 = scmp.eq.s32.totalorder %s31, 0
      %p218 = por %p216, %p217
      %p219 = scmp.ne.s32.totalorder %s208, %s211
      %p220 = scmp.eq.s32.totalorder %s36, 3
      %p221 = por %p219, %p220
      %p222 = scmp.ne.s32.totalorder %s211, %s212
      %p223 = scmp.eq.s32.totalorder %s36, 0
      %p224 = por %p222, %p223
      %p225 = scmp.ne.s32.totalorder %s211, %s212
      %p226 = scmp.eq.s32.totalorder %s37, 3
      %p227 = por %p225, %p226
      %p229 = scmp.ne.s32.totalorder %s212, %s228
      %p230 = scmp.eq.s32.totalorder %s37, 0
      %p231 = por %p229, %p230
      %s233 = sadd.s32 %s232, 1
      %p236 = scmp.eq.s32.totalorder %s31, 3
      %p237 = scmp.ne.s32.totalorder %s232, %s234
      %p238 = scmp.eq.s32.totalorder %s31, 0
      %p239 = por %p237, %p238
      %p240 = scmp.ne.s32.totalorder %s232, %s234
      %p241 = scmp.eq.s32.totalorder %s36, 3
      %p242 = por %p240, %p241
      %p243 = scmp.ne.s32.totalorder %s234, %s235
      %p244 = scmp.eq.s32.totalorder %s36, 0
      %p245 = por %p243, %p244
      %p246 = scmp.ne.s32.totalorder %s234, %s235
      %p247 = scmp.eq.s32.totalorder %s37, 3
      %p248 = por %p246, %p247
      %p250 = scmp.ne.s32.totalorder %s235, %s249
      %p251 = scmp.eq.s32.totalorder %s37, 0
      %p252 = por %p250, %p251
      %s254 = sadd.s32 %s253, 1
      %p257 = scmp.eq.s32.totalorder %s31, 3
      %p258 = scmp.ne.s32.totalorder %s253, %s255
      %p259 = scmp.eq.s32.totalorder %s31, 0
      %p260 = por %p258, %p259
      %p261 = scmp.ne.s32.totalorder %s253, %s255
      %p262 = scmp.eq.s32.totalorder %s36, 3
      %p263 = por %p261, %p262
      %p264 = scmp.ne.s32.totalorder %s255, %s256
      %p265 = scmp.eq.s32.totalorder %s36, 0
      %p266 = por %p264, %p265
      %p267 = scmp.ne.s32.totalorder %s255, %s256
      %p268 = scmp.eq.s32.totalorder %s37, 3
      %p269 = por %p267, %p268
      %p271 = scmp.ne.s32.totalorder %s256, %s270
      %p272 = scmp.eq.s32.totalorder %s37, 0
      %p273 = por %p271, %p272
      %s274 = ssub.s32 %s38, %s57
      %p275 = scmp.eq.s32.totalorder %s274, 0
      %s277 = sadd.s32 %s276, 1
      %s278 = scalar_select %p275, %s276, %s277
      %p281 = pneg %p275
      %p282 = scmp.eq.s32.totalorder %s31, 3
      %p283 = por %p281, %p282
      %p284 = scmp.ne.s32.totalorder %s276, %s279
      %p285 = scmp.eq.s32.totalorder %s31, 0
      %p286 = por %p284, %p285
      %p287 = scmp.ne.s32.totalorder %s276, %s279
      %p288 = scmp.eq.s32.totalorder %s36, 3
      %p289 = por %p287, %p288
      %p290 = scmp.ne.s32.totalorder %s279, %s280
      %p291 = scmp.eq.s32.totalorder %s36, 0
      %p292 = por %p290, %p291
      %p293 = scmp.ne.s32.totalorder %s279, %s280
      %p294 = scmp.eq.s32.totalorder %s37, 3
      %p295 = por %p293, %p294
      %p297 = scmp.ne.s32.totalorder %s280, %s296
      %p298 = scmp.eq.s32.totalorder %s37, 0
      %p299 = por %p297, %p298
      %p300 = scmp.le.s32.totalorder 1, %s31
      %p301 = scmp.lt.s32.totalorder %s31, 5
      %p302 = pnand %p300, %p301
      %p303 = pneg %p302
      // Predicated region
      $region9: #{tpu_custom_call.1} parent=5 // pred_check
        _
      $region10: #{tpu_custom_call.1} parent=5 // pred_check_branch
        %305 = sbr.rel (%p302) target = $region12
      $region11: #{tpu_custom_call.1} parent=5 // pred_region
        %s306 = ssub.s32 %s31, 1
        // Predicated region
        $region13: #{tpu_custom_call.1} parent=11 // pred_check
          %p307 = pneg %p245
        $region14: #{tpu_custom_call.1} parent=11 // pred_check_branch
          %309 = sbr.rel (%p307) target = $region16
        $region15: #{tpu_custom_call.1} parent=11 // pred_region
          _
        $region16: #{tpu_custom_call.1} parent=11 // pred_fallthru
          _
        // Predicated region
        $region17: #{tpu_custom_call.1} parent=11 // pred_check
          %p310 = pneg %p266
        $region18: #{tpu_custom_call.1} parent=11 // pred_check_branch
          %312 = sbr.rel (%p310) target = $region20
        $region19: #{tpu_custom_call.1} parent=11 // pred_region
          _
        $region20: #{tpu_custom_call.1} parent=11 // pred_fallthru
          _
      $region12: #{tpu_custom_call.1} parent=5 // pred_fallthru
        _
      %p313 = scmp.lt.s32.totalorder %s31, 4
      // Predicated region
      $region21: #{tpu_custom_call.1} parent=5 // pred_check
        %p314 = pneg %p313
      $region22: #{tpu_custom_call.1} parent=5 // pred_check_branch
        %316 = sbr.rel (%p314) target = $region24
      $region23: #{tpu_custom_call.1} parent=5 // pred_region
        // Predicated region
        $region25: #{tpu_custom_call.1} parent=23 // pred_check
          %p317 = pneg %p70
        $region26: #{tpu_custom_call.1} parent=23 // pred_check_branch
          %319 = sbr.rel (%p317) target = $region28
        $region27: #{tpu_custom_call.1} parent=23 // pred_region
          %p320 = scmp.lt.s32.totalorder %s38, 1
          %s321 = scalar_select %p320, %s38, 1
          %s322 = smul.addr %s321, 8
          %s323 = scalar_lea.vmem %s2, %s322
        $region28: #{tpu_custom_call.1} parent=23 // pred_fallthru
          _
        // Predicated region
        $region29: #{tpu_custom_call.1} parent=23 // pred_check
          %p324 = pneg %p118
        $region30: #{tpu_custom_call.1} parent=23 // pred_check_branch
          %326 = sbr.rel (%p324) target = $region32
        $region31: #{tpu_custom_call.1} parent=23 // pred_region
          %s327 = smul.u32 %s39, 2
          %s328 = sadd.s32 %s327, %s38
          %s329 = sld [smem:[#allocation7 + %s328]]
          %p330 = scmp.gt.s32.totalorder %s329, 0
          %s331 = ssub.s32 %s329, 1
          %p332 = scmp.lt.s32.totalorder %s40, %s331
          %s333 = scalar_select %p332, %s40, %s331
          %s334 = scalar_select %p330, %s333, 0
          %s335 = sld [smem:[#allocation6 + %s328]]
          %s336 = sadd.s32 %s335, %s334
          %s337 = smul.u32 25, %s336
          %p338 = scmp.lt.s32.totalorder %s39, 1
          %s339 = scalar_select %p338, %s39, 1
          %p340 = scmp.lt.s32.totalorder %s337, 24
          %s341 = scalar_select %p340, %s337, 24
          %s342 = smul.addr %s339, 25
          %s343 = sadd.s32 %s341, %s342
          %s344 = smul.addr %s343, 8
          %s345 = scalar_lea.vmem %s3, %s344
          %s346 = smul.u32 %s39, 2
          %s347 = sadd.s32 %s346, %s38
          %s348 = sld [smem:[#allocation7 + %s347]]
          %p349 = scmp.gt.s32.totalorder %s348, 0
          %s350 = ssub.s32 %s348, 1
          %p351 = scmp.lt.s32.totalorder %s40, %s350
          %s352 = scalar_select %p351, %s40, %s350
          %s353 = scalar_select %p349, %s352, 0
          %s354 = sld [smem:[#allocation6 + %s347]]
          %s355 = sadd.s32 %s354, %s353
          %s356 = smul.u32 25, %s355
        $region32: #{tpu_custom_call.1} parent=23 // pred_fallthru
          _
        // Predicated region
        $region33: #{tpu_custom_call.1} parent=23 // pred_check
          %p357 = pneg %p166
        $region34: #{tpu_custom_call.1} parent=23 // pred_check_branch
          %359 = sbr.rel (%p357) target = $region36
        $region35: #{tpu_custom_call.1} parent=23 // pred_region
          %s360 = smul.u32 %s39, 2
          %s361 = sadd.s32 %s360, %s38
          %s362 = sld [smem:[#allocation7 + %s361]]
          %p363 = scmp.gt.s32.totalorder %s362, 0
          %s364 = ssub.s32 %s362, 1
          %p365 = scmp.lt.s32.totalorder %s40, %s364
          %s366 = scalar_select %p365, %s40, %s364
          %s367 = scalar_select %p363, %s366, 0
          %s368 = sld [smem:[#allocation6 + %s361]]
          %s369 = sadd.s32 %s368, %s367
          %s370 = smul.u32 25, %s369
          %p371 = scmp.lt.s32.totalorder %s39, 1
          %s372 = scalar_select %p371, %s39, 1
          %p373 = scmp.lt.s32.totalorder %s370, 24
          %s374 = scalar_select %p373, %s370, 24
          %s375 = smul.addr %s372, 25
          %s376 = sadd.s32 %s374, %s375
          %s377 = smul.addr %s376, 8
          %s378 = scalar_lea.vmem %s4, %s377
          %s379 = smul.u32 %s39, 2
          %s380 = sadd.s32 %s379, %s38
          %s381 = sld [smem:[#allocation7 + %s380]]
          %p382 = scmp.gt.s32.totalorder %s381, 0
          %s383 = ssub.s32 %s381, 1
          %p384 = scmp.lt.s32.totalorder %s40, %s383
          %s385 = scalar_select %p384, %s40, %s383
          %s386 = scalar_select %p382, %s385, 0
          %s387 = sld [smem:[#allocation6 + %s380]]
          %s388 = sadd.s32 %s387, %s386
          %s389 = smul.u32 25, %s388
        $region36: #{tpu_custom_call.1} parent=23 // pred_fallthru
          _
        // Predicated region
        $region37: #{tpu_custom_call.1} parent=23 // pred_check
          %p390 = pneg %p192
        $region38: #{tpu_custom_call.1} parent=23 // pred_check_branch
          %392 = sbr.rel (%p390) target = $region40
        $region39: #{tpu_custom_call.1} parent=23 // pred_region
          %p393 = scmp.lt.s32.totalorder %s39, 1
          %s394 = scalar_select %p393, %s39, 1
          %s395 = smul.addr %s394, 4
          %s396 = smul.addr %s395, 8
          %s397 = scalar_lea.vmem %s5, %s396
        $region40: #{tpu_custom_call.1} parent=23 // pred_fallthru
          _
        // Predicated region
        $region41: #{tpu_custom_call.1} parent=23 // pred_check
          %p398 = pneg %p218
        $region42: #{tpu_custom_call.1} parent=23 // pred_check_branch
          %400 = sbr.rel (%p398) target = $region44
        $region43: #{tpu_custom_call.1} parent=23 // pred_region
          %p401 = scmp.lt.s32.totalorder %s39, 1
          %s402 = scalar_select %p401, %s39, 1
          %s403 = smul.addr %s402, 4
          %s404 = smul.addr %s403, 8
          %s405 = scalar_lea.vmem %s6, %s404
        $region44: #{tpu_custom_call.1} parent=23 // pred_fallthru
          _
      $region24: #{tpu_custom_call.1} parent=5 // pred_fallthru
        _
      %p406 = scmp.le.s32.totalorder 1, %s31
      %p407 = scmp.lt.s32.totalorder %s31, 5
      %p408 = pnand %p406, %p407
      %p409 = pneg %p408
      // Predicated region
      $region45: #{tpu_custom_call.1} parent=5 // pred_check
        _
      $region46: #{tpu_custom_call.1} parent=5 // pred_check_branch
        %411 = sbr.rel (%p408) target = $region48
      $region47: #{tpu_custom_call.1} parent=5 // pred_region
        %s412 = ssub.s32 %s31, 1
        %p413 = scmp.lt.s32.totalorder %s41, 1
        %s414 = scalar_select %p413, %s41, 1
        %s415 = smul.addr %s414, 8
        %s416 = scalar_lea.vmem %s2, %s415
        %p417 = pneg %p76
        %p418 = pneg %p73
        %s419 = smul.u32 %s42, 2
        %s420 = sadd.s32 %s419, %s41
        %s421 = sld [smem:[#allocation7 + %s420]]
        %p422 = scmp.gt.s32.totalorder %s421, 0
        %s423 = ssub.s32 %s421, 1
        %p424 = scmp.lt.s32.totalorder %s43, %s423
        %s425 = scalar_select %p424, %s43, %s423
        %s426 = scalar_select %p422, %s425, 0
        %s427 = sld [smem:[#allocation6 + %s420]]
        %s428 = sadd.s32 %s427, %s426
        %s429 = smul.u32 25, %s428
        %p430 = scmp.lt.s32.totalorder %s42, 1
        %s431 = scalar_select %p430, %s42, 1
        %p432 = scmp.lt.s32.totalorder %s429, 24
        %s433 = scalar_select %p432, %s429, 24
        %s434 = smul.addr %s431, 25
        %s435 = sadd.s32 %s433, %s434
        %s436 = smul.addr %s435, 8
        %s437 = scalar_lea.vmem %s3, %s436
        %p438 = pneg %p124
        %p439 = pneg %p121
        %s440 = smul.u32 %s42, 2
        %s441 = sadd.s32 %s440, %s41
        %s442 = sld [smem:[#allocation7 + %s441]]
        %p443 = scmp.gt.s32.totalorder %s442, 0
        %s444 = ssub.s32 %s442, 1
        %p445 = scmp.lt.s32.totalorder %s43, %s444
        %s446 = scalar_select %p445, %s43, %s444
        %s447 = scalar_select %p443, %s446, 0
        %s448 = sld [smem:[#allocation6 + %s441]]
        %s449 = sadd.s32 %s448, %s447
        %s450 = smul.u32 25, %s449
        %p451 = scmp.lt.s32.totalorder %s42, 1
        %s452 = scalar_select %p451, %s42, 1
        %p453 = scmp.lt.s32.totalorder %s450, 24
        %s454 = scalar_select %p453, %s450, 24
        %s455 = smul.addr %s452, 25
        %s456 = sadd.s32 %s454, %s455
        %s457 = smul.addr %s456, 8
        %s458 = scalar_lea.vmem %s4, %s457
        %p459 = pneg %p172
        %p460 = pneg %p169
        %p461 = scmp.lt.s32.totalorder %s42, 1
        %s462 = scalar_select %p461, %s42, 1
        %s463 = smul.addr %s462, 4
        %s464 = smul.addr %s463, 8
        %s465 = scalar_lea.vmem %s5, %s464
        %p466 = pneg %p198
        %p467 = pneg %p195
        %p468 = scmp.lt.s32.totalorder %s42, 1
        %s469 = scalar_select %p468, %s42, 1
        %s470 = smul.addr %s469, 4
        %s471 = smul.addr %s470, 8
        %s472 = scalar_lea.vmem %s6, %s471
        %p473 = pneg %p224
        %p474 = pneg %p221
        %p475 = pneg %p245
        %p476 = pneg %p242
        %p477 = pneg %p266
        %p478 = pneg %p263
        %p479 = pneg %p292
        %p480 = pneg %p289
        %s481 = sand.u32 %s279, 1
        %s482 = scalar_lea.sflag [#allocation9], %s481
        %s483 = sand.u32 %s279, 1
        %s484 = smul.addr %s483, 8
        %s485 = scalar_lea.vmem [#allocation8], %s484
        %p486 = scmp.lt.s32.totalorder %s41, 1
        %s487 = scalar_select %p486, %s41, 1
        %s488 = smul.addr %s487, 8
        %s489 = scalar_lea.vmem %s2, %s488
        %s490 = smul.u32 %s42, 2
        %s491 = sadd.s32 %s490, %s41
        %s492 = sld [smem:[#allocation7 + %s491]]
        %p493 = scmp.gt.s32.totalorder %s492, 0
        %s494 = ssub.s32 %s492, 1
        %p495 = scmp.lt.s32.totalorder %s43, %s494
        %s496 = scalar_select %p495, %s43, %s494
        %s497 = scalar_select %p493, %s496, 0
        %s498 = sld [smem:[#allocation6 + %s491]]
        %s499 = sadd.s32 %s498, %s497
        %s500 = smul.u32 25, %s499
        %p501 = scmp.lt.s32.totalorder %s42, 1
        %s502 = scalar_select %p501, %s42, 1
        %p503 = scmp.lt.s32.totalorder %s500, 24
        %s504 = scalar_select %p503, %s500, 24
        %s505 = smul.addr %s502, 25
        %s506 = sadd.s32 %s504, %s505
        %s507 = smul.addr %s506, 8
        %s508 = scalar_lea.vmem %s3, %s507
        %s509 = smul.u32 %s42, 2
        %s510 = sadd.s32 %s509, %s41
        %s511 = sld [smem:[#allocation7 + %s510]]
        %p512 = scmp.gt.s32.totalorder %s511, 0
        %s513 = ssub.s32 %s511, 1
        %p514 = scmp.lt.s32.totalorder %s43, %s513
        %s515 = scalar_select %p514, %s43, %s513
        %s516 = scalar_select %p512, %s515, 0
        %s517 = sld [smem:[#allocation6 + %s510]]
        %s518 = sadd.s32 %s517, %s516
        %s519 = smul.u32 25, %s518
        %s520 = smul.u32 %s42, 2
        %s521 = sadd.s32 %s520, %s41
        %s522 = sld [smem:[#allocation7 + %s521]]
        %p523 = scmp.gt.s32.totalorder %s522, 0
        %s524 = ssub.s32 %s522, 1
        %p525 = scmp.lt.s32.totalorder %s43, %s524
        %s526 = scalar_select %p525, %s43, %s524
        %s527 = scalar_select %p523, %s526, 0
        %s528 = sld [smem:[#allocation6 + %s521]]
        %s529 = sadd.s32 %s528, %s527
        %s530 = smul.u32 25, %s529
        %p531 = scmp.lt.s32.totalorder %s42, 1
        %s532 = scalar_select %p531, %s42, 1
        %p533 = scmp.lt.s32.totalorder %s530, 24
        %s534 = scalar_select %p533, %s530, 24
        %s535 = smul.addr %s532, 25
        %s536 = sadd.s32 %s534, %s535
        %s537 = smul.addr %s536, 8
        %s538 = scalar_lea.vmem %s4, %s537
        %s539 = smul.u32 %s42, 2
        %s540 = sadd.s32 %s539, %s41
        %s541 = sld [smem:[#allocation7 + %s540]]
        %p542 = scmp.gt.s32.totalorder %s541, 0
        %s543 = ssub.s32 %s541, 1
        %p544 = scmp.lt.s32.totalorder %s43, %s543
        %s545 = scalar_select %p544, %s43, %s543
        %s546 = scalar_select %p542, %s545, 0
        %s547 = sld [smem:[#allocation6 + %s540]]
        %s548 = sadd.s32 %s547, %s546
        %s549 = smul.u32 25, %s548
        %p550 = scmp.lt.s32.totalorder %s42, 1
        %s551 = scalar_select %p550, %s42, 1
        %s552 = smul.addr %s551, 4
        %s553 = smul.addr %s552, 8
        %s554 = scalar_lea.vmem %s5, %s553
        %p555 = scmp.lt.s32.totalorder %s42, 1
        %s556 = scalar_select %p555, %s42, 1
        %s557 = smul.addr %s556, 4
        %s558 = smul.addr %s557, 8
        %s559 = scalar_lea.vmem %s6, %s558
        %p560 = scmp.eq.s32.totalorder %s42, 0
        %p561 = scmp.eq.s32.totalorder %s43, 0
        %p562 = pnand %p560, %p561
        %p563 = pneg %p562
        // Predicated region
        $region49: #{tpu_custom_call.1} parent=47 // pred_check
          _
        $region50: #{tpu_custom_call.1} parent=47 // pred_check_branch
          %565 = sbr.rel (%p562) target = $region52
        $region51: #{tpu_custom_call.1} parent=47 // pred_region
          %v566 = vld [vmem:[%s489] sm:$0xff]
          %v567 = vld [vmem:[%s7] sm:$0xff]
          %v568 = vld [vmem:[%s7 + $0x8] sm:$0xff]
          %v569 = vld [vmem:[%s7 + $0x10] sm:$0xff]
          %v570 = vld [vmem:[%s7 + $0x18] sm:$0xff]
          %v571 = vld [vmem:[%s8] sm:$0x1]
          %v573 = vperm.slane %v571, 0
          %vm575 = vcmask 261120
          %v577 = vsel %vm575, %v566, 0
          %579 = vmatpush.msra.mxu0 0.0
          %580 = vmatpush.msra.mxu0 0.0
          %581 = vmatpush.msra.mxu0 0.0
          %582 = vmatpush.msra.mxu0 0.0
          %583 = vmatpush.msra.mxu0 0.0
          %584 = vmatpush.msra.mxu0 0.0
          %585 = vmatpush.msra.mxu0 0.0
          %586 = vmatpush.msra.mxu0 0.0
          %587 = vmatpush.msra.mxu0 0.0
          %588 = vmatpush.msra.mxu0 0.0
          %589 = vmatpush.msra.mxu0 0.0
          %590 = vmatpush.msra.mxu0 0.0
          %591 = vmatpush.msra.mxu0 %v570
          %592 = vmatpush.msra.mxu0 %v569
          %593 = vmatpush.msra.mxu0 %v568
          %594 = vmatpush.msra.mxu0 %v567
          %595 = vmatmul.f32.gmra.mxu0 %v577
          %v596 = vpop.f32.mrf.mxu0
          %v597 = vadd.f32 %v573, %v596
          %598 = vdwg.mxu0
          %599 = vst [vmem:[#allocation4] sm:$0xff] %v597
        $region52: #{tpu_custom_call.1} parent=47 // pred_fallthru
          _
        // Predicated region
        $region53: #{tpu_custom_call.1} parent=47 // pred_check
          %p600 = pneg %p561
        $region54: #{tpu_custom_call.1} parent=47 // pred_check_branch
          %602 = sbr.rel (%p600) target = $region56
        $region55: #{tpu_custom_call.1} parent=47 // pred_region
          %v603 = vld [vmem:[%s489] sm:$0xff]
          %v604 = vld [vmem:[%s554] sm:$0xff]
          %v605 = vld [vmem:[%s554 + $0x8] sm:$0xff]
          %v606 = vld [vmem:[%s554 + $0x10] sm:$0xff]
          %v607 = vld [vmem:[%s554 + $0x18] sm:$0xff]
          %vm608 = vcmask 261120
          %v610 = vsel %vm608, %v603, 0
          %612 = vmatpush.msra.mxu0 0.0
          %613 = vmatpush.msra.mxu0 0.0
          %614 = vmatpush.msra.mxu0 0.0
          %615 = vmatpush.msra.mxu0 0.0
          %616 = vmatpush.msra.mxu0 0.0
          %617 = vmatpush.msra.mxu0 0.0
          %618 = vmatpush.msra.mxu0 0.0
          %619 = vmatpush.msra.mxu0 0.0
          %620 = vmatpush.msra.mxu0 0.0
          %621 = vmatpush.msra.mxu0 0.0
          %622 = vmatpush.msra.mxu0 0.0
          %623 = vmatpush.msra.mxu0 0.0
          %624 = vmatpush.msra.mxu0 %v607
          %625 = vmatpush.msra.mxu0 %v606
          %626 = vmatpush.msra.mxu0 %v605
          %627 = vmatpush.msra.mxu0 %v604
          %628 = vmatmul.f32.gmra.mxu0 %v610
          %v629 = vpop.f32.mrf.mxu0
          %v630 = vadd.f32 0.0, %v629
          %631 = vdwg.mxu0
          %632 = vst.msk [vmem:[#allocation2] sm:$0xff] %vm608, %v630
          %633 = vst.msk [vmem:[#allocation3] sm:$0xff] %vm608, 0.0
        $region56: #{tpu_custom_call.1} parent=47 // pred_fallthru
          _
        %s634 = smul.u32 %s42, 2
        %s635 = sadd.s32 %s634, %s41
        %s636 = sld [smem:[#allocation7 + %s635]]
        %p637 = scmp.lt.s32.totalorder %s43, %s636
        // Predicated region
        $region57: #{tpu_custom_call.1} parent=47 // pred_check
          %p638 = pneg %p637
        $region58: #{tpu_custom_call.1} parent=47 // pred_check_branch
          %640 = sbr.rel (%p638) target = $region60
        $region59: #{tpu_custom_call.1} parent=47 // pred_region
          %s641 = smul.u32 %s41, 8
          %v642 = vld [vmem:[%s508] sm:$0xff]
          %v643 = vld [vmem:[%s508 + $0x8] sm:$0xff]
          %v644 = vld [vmem:[%s508 + $0x10] sm:$0xff]
          %v645 = vld [vmem:[%s508 + $0x18] sm:$0xff]
          %v646 = vld [vmem:[%s508 + $0x20] sm:$0xff]
          %v647 = vld [vmem:[%s508 + $0x28] sm:$0xff]
          %v648 = vld [vmem:[%s508 + $0x30] sm:$0xff]
          %v649 = vld [vmem:[%s508 + $0x38] sm:$0xff]
          %v650 = vld [vmem:[%s508 + $0x40] sm:$0xff]
          %v651 = vld [vmem:[%s508 + $0x48] sm:$0xff]
          %v652 = vld [vmem:[%s508 + $0x50] sm:$0xff]
          %v653 = vld [vmem:[%s508 + $0x58] sm:$0xff]
          %v654 = vld [vmem:[%s508 + $0x60] sm:$0xff]
          %v655 = vld [vmem:[%s508 + $0x68] sm:$0xff]
          %v656 = vld [vmem:[%s508 + $0x70] sm:$0xff]
          %v657 = vld [vmem:[%s508 + $0x78] sm:$0xff]
          %v658 = vld [vmem:[%s508 + $0x80] sm:$0xff]
          %v659 = vld [vmem:[%s508 + $0x88] sm:$0xff]
          %v660 = vld [vmem:[%s508 + $0x90] sm:$0xff]
          %v661 = vld [vmem:[%s508 + $0x98] sm:$0xff]
          %v662 = vld [vmem:[%s508 + $0xa0] sm:$0xff]
          %v663 = vld [vmem:[%s508 + $0xa8] sm:$0xff]
          %v664 = vld [vmem:[%s508 + $0xb0] sm:$0xff]
          %v665 = vld [vmem:[%s508 + $0xb8] sm:$0xff]
          %v666 = vld [vmem:[%s508 + $0xc0] sm:$0xff]
          %v667 = vstv %s641
          %v668 = vsub.s32 %v642, %v667
          %v669 = vsub.s32 %v643, %v667
          %v670 = vsub.s32 %v644, %v667
          %v671 = vsub.s32 %v645, %v667
          %v672 = vsub.s32 %v646, %v667
          %v673 = vsub.s32 %v647, %v667
          %v674 = vsub.s32 %v648, %v667
          %v675 = vsub.s32 %v649, %v667
          %v676 = vsub.s32 %v650, %v667
          %v677 = vsub.s32 %v651, %v667
          %v678 = vsub.s32 %v652, %v667
          %v679 = vsub.s32 %v653, %v667
          %v680 = vsub.s32 %v654, %v667
          %v681 = vsub.s32 %v655, %v667
          %v682 = vsub.s32 %v656, %v667
          %v683 = vsub.s32 %v657, %v667
          %v684 = vsub.s32 %v658, %v667
          %v685 = vsub.s32 %v659, %v667
          %v686 = vsub.s32 %v660, %v667
          %v687 = vsub.s32 %v661, %v667
          %v688 = vsub.s32 %v662, %v667
          %v689 = vsub.s32 %v663, %v667
          %v690 = vsub.s32 %v664, %v667
          %v691 = vsub.s32 %v665, %v667
          %v692 = vsub.s32 %v666, %v667
          %v693 = vlaneseq
          %v694 = vand.u32 %v693, 127
          %695 = vset.pattern.permute.xlu0 0
          %696 = vperm.xlu0 %695, %v668
          %v697 = vpop.permute.xlu0 %696
          %698 = vset.pattern.permute.xlu0 0
          %699 = vperm.xlu0 %698, %v669
          %v700 = vpop.permute.xlu0 %699
          %701 = vset.pattern.permute.xlu0 0
          %702 = vperm.xlu0 %701, %v670
          %v703 = vpop.permute.xlu0 %702
          %704 = vset.pattern.permute.xlu0 0
          %705 = vperm.xlu0 %704, %v671
          %v706 = vpop.permute.xlu0 %705
          %707 = vset.pattern.permute.xlu0 0
          %708 = vperm.xlu0 %707, %v672
          %v709 = vpop.permute.xlu0 %708
          %710 = vset.pattern.permute.xlu0 0
          %711 = vperm.xlu0 %710, %v673
          %v712 = vpop.permute.xlu0 %711
          %713 = vset.pattern.permute.xlu0 0
          %714 = vperm.xlu0 %713, %v674
          %v715 = vpop.permute.xlu0 %714
          %716 = vset.pattern.permute.xlu0 0
          %717 = vperm.xlu0 %716, %v675
          %v718 = vpop.permute.xlu0 %717
          %719 = vset.pattern.permute.xlu0 0
          %720 = vperm.xlu0 %719, %v676
          %v721 = vpop.permute.xlu0 %720
          %722 = vset.pattern.permute.xlu0 0
          %723 = vperm.xlu0 %722, %v677
          %v724 = vpop.permute.xlu0 %723
          %725 = vset.pattern.permute.xlu0 0
          %726 = vperm.xlu0 %725, %v678
          %v727 = vpop.permute.xlu0 %726
          %728 = vset.pattern.permute.xlu0 0
          %729 = vperm.xlu0 %728, %v679
          %v730 = vpop.permute.xlu0 %729
          %731 = vset.pattern.permute.xlu0 0
          %732 = vperm.xlu0 %731, %v680
          %v733 = vpop.permute.xlu0 %732
          %734 = vset.pattern.permute.xlu0 0
          %735 = vperm.xlu0 %734, %v681
          %v736 = vpop.permute.xlu0 %735
          %737 = vset.pattern.permute.xlu0 0
          %738 = vperm.xlu0 %737, %v682
          %v739 = vpop.permute.xlu0 %738
          %740 = vset.pattern.permute.xlu0 0
          %741 = vperm.xlu0 %740, %v683
          %v742 = vpop.permute.xlu0 %741
          %743 = vset.pattern.permute.xlu0 0
          %744 = vperm.xlu0 %743, %v684
          %v745 = vpop.permute.xlu0 %744
          %746 = vset.pattern.permute.xlu0 0
          %747 = vperm.xlu0 %746, %v685
          %v748 = vpop.permute.xlu0 %747
          %749 = vset.pattern.permute.xlu0 0
          %750 = vperm.xlu0 %749, %v686
          %v751 = vpop.permute.xlu0 %750
          %752 = vset.pattern.permute.xlu0 0
          %753 = vperm.xlu0 %752, %v687
          %v754 = vpop.permute.xlu0 %753
          %755 = vset.pattern.permute.xlu0 0
          %756 = vperm.xlu0 %755, %v688
          %v757 = vpop.permute.xlu0 %756
          %758 = vset.pattern.permute.xlu0 0
          %759 = vperm.xlu0 %758, %v689
          %v760 = vpop.permute.xlu0 %759
          %761 = vset.pattern.permute.xlu0 0
          %762 = vperm.xlu0 %761, %v690
          %v763 = vpop.permute.xlu0 %762
          %764 = vset.pattern.permute.xlu0 0
          %765 = vperm.xlu0 %764, %v691
          %v766 = vpop.permute.xlu0 %765
          %767 = vset.pattern.permute.xlu0 0
          %768 = vperm.xlu0 %767, %v692
          %v769 = vpop.permute.xlu0 %768
          %vm770 = vcmp.eq.s32.totalorder %v697, %v694
          %vm771 = vcmp.eq.s32.totalorder %v700, %v694
          %vm772 = vcmp.eq.s32.totalorder %v703, %v694
          %vm773 = vcmp.eq.s32.totalorder %v706, %v694
          %vm774 = vcmp.eq.s32.totalorder %v709, %v694
          %vm775 = vcmp.eq.s32.totalorder %v712, %v694
          %vm776 = vcmp.eq.s32.totalorder %v715, %v694
          %vm777 = vcmp.eq.s32.totalorder %v718, %v694
          %vm778 = vcmp.eq.s32.totalorder %v721, %v694
          %vm779 = vcmp.eq.s32.totalorder %v724, %v694
          %vm780 = vcmp.eq.s32.totalorder %v727, %v694
          %vm781 = vcmp.eq.s32.totalorder %v730, %v694
          %vm782 = vcmp.eq.s32.totalorder %v733, %v694
          %vm783 = vcmp.eq.s32.totalorder %v736, %v694
          %vm784 = vcmp.eq.s32.totalorder %v739, %v694
          %vm785 = vcmp.eq.s32.totalorder %v742, %v694
          %vm786 = vcmp.eq.s32.totalorder %v745, %v694
          %vm787 = vcmp.eq.s32.totalorder %v748, %v694
          %vm788 = vcmp.eq.s32.totalorder %v751, %v694
          %vm789 = vcmp.eq.s32.totalorder %v754, %v694
          %vm790 = vcmp.eq.s32.totalorder %v757, %v694
          %vm791 = vcmp.eq.s32.totalorder %v760, %v694
          %vm792 = vcmp.eq.s32.totalorder %v763, %v694
          %vm793 = vcmp.eq.s32.totalorder %v766, %v694
          %vm794 = vcmp.eq.s32.totalorder %v769, %v694
          %v795 = vsel %vm770, 1.0, 0.0
          %v796 = vsel %vm771, 1.0, 0.0
          %v797 = vsel %vm772, 1.0, 0.0
          %v798 = vsel %vm773, 1.0, 0.0
          %v799 = vsel %vm774, 1.0, 0.0
          %v800 = vsel %vm775, 1.0, 0.0
          %v801 = vsel %vm776, 1.0, 0.0
          %v802 = vsel %vm777, 1.0, 0.0
          %v803 = vsel %vm778, 1.0, 0.0
          %v804 = vsel %vm779, 1.0, 0.0
          %v805 = vsel %vm780, 1.0, 0.0
          %v806 = vsel %vm781, 1.0, 0.0
          %v807 = vsel %vm782, 1.0, 0.0
          %v808 = vsel %vm783, 1.0, 0.0
          %v809 = vsel %vm784, 1.0, 0.0
          %v810 = vsel %vm785, 1.0, 0.0
          %v811 = vsel %vm786, 1.0, 0.0
          %v812 = vsel %vm787, 1.0, 0.0
          %v813 = vsel %vm788, 1.0, 0.0
          %v814 = vsel %vm789, 1.0, 0.0
          %v815 = vsel %vm790, 1.0, 0.0
          %v816 = vsel %vm791, 1.0, 0.0
          %v817 = vsel %vm792, 1.0, 0.0
          %v818 = vsel %vm793, 1.0, 0.0
          %v819 = vsel %vm794, 1.0, 0.0
          %v820 = vld [vmem:[#allocation2] sm:$0xff]
          %v821 = vld [vmem:[%s538] sm:$0xff]
          %v822 = vld [vmem:[%s538 + $0x8] sm:$0xff]
          %v823 = vld [vmem:[%s538 + $0x10] sm:$0xff]
          %v824 = vld [vmem:[%s538 + $0x18] sm:$0xff]
          %v825 = vld [vmem:[%s538 + $0x20] sm:$0xff]
          %v826 = vld [vmem:[%s538 + $0x28] sm:$0xff]
          %v827 = vld [vmem:[%s538 + $0x30] sm:$0xff]
          %v828 = vld [vmem:[%s538 + $0x38] sm:$0xff]
          %v829 = vld [vmem:[%s538 + $0x40] sm:$0xff]
          %v830 = vld [vmem:[%s538 + $0x48] sm:$0xff]
          %v831 = vld [vmem:[%s538 + $0x50] sm:$0xff]
          %v832 = vld [vmem:[%s538 + $0x58] sm:$0xff]
          %v833 = vld [vmem:[%s538 + $0x60] sm:$0xff]
          %v834 = vld [vmem:[%s538 + $0x68] sm:$0xff]
          %v835 = vld [vmem:[%s538 + $0x70] sm:$0xff]
          %v836 = vld [vmem:[%s538 + $0x78] sm:$0xff]
          %v837 = vld [vmem:[%s538 + $0x80] sm:$0xff]
          %v838 = vld [vmem:[%s538 + $0x88] sm:$0xff]
          %v839 = vld [vmem:[%s538 + $0x90] sm:$0xff]
          %v840 = vld [vmem:[%s538 + $0x98] sm:$0xff]
          %v841 = vld [vmem:[%s538 + $0xa0] sm:$0xff]
          %v842 = vld [vmem:[%s538 + $0xa8] sm:$0xff]
          %v843 = vld [vmem:[%s538 + $0xb0] sm:$0xff]
          %v844 = vld [vmem:[%s538 + $0xb8] sm:$0xff]
          %v845 = vld [vmem:[%s538 + $0xc0] sm:$0xff]
          %vm846 = vcmask 64512
          %v848 = vsel %vm846, %v795, 0
          %v851 = vsel %vm846, %v796, 0
          %v854 = vsel %vm846, %v797, 0
          %v857 = vsel %vm846, %v798, 0
          %v860 = vsel %vm846, %v799, 0
          %v863 = vsel %vm846, %v800, 0
          %v866 = vsel %vm846, %v801, 0
          %v869 = vsel %vm846, %v802, 0
          %v872 = vsel %vm846, %v803, 0
          %v875 = vsel %vm846, %v804, 0
          %v878 = vsel %vm846, %v805, 0
          %v881 = vsel %vm846, %v806, 0
          %v884 = vsel %vm846, %v807, 0
          %v887 = vsel %vm846, %v808, 0
          %v890 = vsel %vm846, %v809, 0
          %v893 = vsel %vm846, %v810, 0
          %v896 = vsel %vm846, %v811, 0
          %v899 = vsel %vm846, %v812, 0
          %v902 = vsel %vm846, %v813, 0
          %v905 = vsel %vm846, %v814, 0
          %v908 = vsel %vm846, %v815, 0
          %v911 = vsel %vm846, %v816, 0
          %v914 = vsel %vm846, %v817, 0
          %v917 = vsel %vm846, %v818, 0
          %v920 = vsel %vm846, %v819, 0
          %922 = vmatpush.msra.mxu0 0.0
          %923 = vmatpush.msra.mxu0 0.0
          %924 = vmatpush.msra.mxu0 0.0
          %925 = vmatpush.msra.mxu0 0.0
          %926 = vmatpush.msra.mxu0 0.0
          %927 = vmatpush.msra.mxu0 0.0
          %928 = vmatpush.msra.mxu0 0.0
          %929 = vmatpush.msra.mxu0 0.0
          %930 = vmatpush.msra.mxu0 0.0
          %931 = vmatpush.msra.mxu0 0.0
          %932 = vmatpush.msra.mxu0 0.0
          %933 = vmatpush.msra.mxu0 0.0
          %934 = vmatpush.msra.mxu0 0.0
          %935 = vmatpush.msra.mxu0 0.0
          %936 = vmatpush.msra.mxu0 0.0
          %937 = vmatpush.msra.mxu0 %v820
          %938 = vmatmul.f32.gmra.mxu0 %v848
          %v939 = vpop.f32.mrf.mxu0
          %v940 = vadd.f32 %v821, %v939
          %941 = vmatmul.f32.gmra.mxu0 %v851
          %v942 = vpop.f32.mrf.mxu0
          %v943 = vadd.f32 %v822, %v942
          %944 = vmatmul.f32.gmra.mxu0 %v854
          %v945 = vpop.f32.mrf.mxu0
          %v946 = vadd.f32 %v823, %v945
          %947 = vmatmul.f32.gmra.mxu0 %v857
          %v948 = vpop.f32.mrf.mxu0
          %v949 = vadd.f32 %v824, %v948
          %950 = vmatmul.f32.gmra.mxu0 %v860
          %v951 = vpop.f32.mrf.mxu0
          %v952 = vadd.f32 %v825, %v951
          %953 = vmatmul.f32.gmra.mxu0 %v863
          %v954 = vpop.f32.mrf.mxu0
          %v955 = vadd.f32 %v826, %v954
          %956 = vmatmul.f32.gmra.mxu0 %v866
          %v957 = vpop.f32.mrf.mxu0
          %v958 = vadd.f32 %v827, %v957
          %959 = vmatmul.f32.gmra.mxu0 %v869
          %v960 = vpop.f32.mrf.mxu0
          %v961 = vadd.f32 %v828, %v960
          %962 = vmatmul.f32.gmra.mxu0 %v872
          %v963 = vpop.f32.mrf.mxu0
          %v964 = vadd.f32 %v829, %v963
          %965 = vmatmul.f32.gmra.mxu0 %v875
          %v966 = vpop.f32.mrf.mxu0
          %v967 = vadd.f32 %v830, %v966
          %968 = vmatmul.f32.gmra.mxu0 %v878
          %v969 = vpop.f32.mrf.mxu0
          %v970 = vadd.f32 %v831, %v969
          %971 = vmatmul.f32.gmra.mxu0 %v881
          %v972 = vpop.f32.mrf.mxu0
          %v973 = vadd.f32 %v832, %v972
          %974 = vmatmul.f32.gmra.mxu0 %v884
          %v975 = vpop.f32.mrf.mxu0
          %v976 = vadd.f32 %v833, %v975
          %977 = vmatmul.f32.gmra.mxu0 %v887
          %v978 = vpop.f32.mrf.mxu0
          %v979 = vadd.f32 %v834, %v978
          %980 = vmatmul.f32.gmra.mxu0 %v890
          %v981 = vpop.f32.mrf.mxu0
          %v982 = vadd.f32 %v835, %v981
          %983 = vmatmul.f32.gmra.mxu0 %v893
          %v984 = vpop.f32.mrf.mxu0
          %v985 = vadd.f32 %v836, %v984
          %986 = vmatmul.f32.gmra.mxu0 %v896
          %v987 = vpop.f32.mrf.mxu0
          %v988 = vadd.f32 %v837, %v987
          %989 = vmatmul.f32.gmra.mxu0 %v899
          %v990 = vpop.f32.mrf.mxu0
          %v991 = vadd.f32 %v838, %v990
          %992 = vmatmul.f32.gmra.mxu0 %v902
          %v993 = vpop.f32.mrf.mxu0
          %v994 = vadd.f32 %v839, %v993
          %995 = vmatmul.f32.gmra.mxu0 %v905
          %v996 = vpop.f32.mrf.mxu0
          %v997 = vadd.f32 %v840, %v996
          %998 = vmatmul.f32.gmra.mxu0 %v908
          %v999 = vpop.f32.mrf.mxu0
          %v1000 = vadd.f32 %v841, %v999
          %1001 = vmatmul.f32.gmra.mxu0 %v911
          %v1002 = vpop.f32.mrf.mxu0
          %v1003 = vadd.f32 %v842, %v1002
          %1004 = vmatmul.f32.gmra.mxu0 %v914
          %v1005 = vpop.f32.mrf.mxu0
          %v1006 = vadd.f32 %v843, %v1005
          %1007 = vmatmul.f32.gmra.mxu0 %v917
          %v1008 = vpop.f32.mrf.mxu0
          %v1009 = vadd.f32 %v844, %v1008
          %1010 = vmatmul.f32.gmra.mxu0 %v920
          %v1011 = vpop.f32.mrf.mxu0
          %v1012 = vadd.f32 %v845, %v1011
          %1013 = vdwg.mxu0
          %v1014 = vmax.f32 %v940, 0.0
          %v1015 = vmax.f32 %v943, 0.0
          %v1016 = vmax.f32 %v946, 0.0
          %v1017 = vmax.f32 %v949, 0.0
          %v1018 = vmax.f32 %v952, 0.0
          %v1019 = vmax.f32 %v955, 0.0
          %v1020 = vmax.f32 %v958, 0.0
          %v1021 = vmax.f32 %v961, 0.0
          %v1022 = vmax.f32 %v964, 0.0
          %v1023 = vmax.f32 %v967, 0.0
          %v1024 = vmax.f32 %v970, 0.0
          %v1025 = vmax.f32 %v973, 0.0
          %v1026 = vmax.f32 %v976, 0.0
          %v1027 = vmax.f32 %v979, 0.0
          %v1028 = vmax.f32 %v982, 0.0
          %v1029 = vmax.f32 %v985, 0.0
          %v1030 = vmax.f32 %v988, 0.0
          %v1031 = vmax.f32 %v991, 0.0
          %v1032 = vmax.f32 %v994, 0.0
          %v1033 = vmax.f32 %v997, 0.0
          %v1034 = vmax.f32 %v1000, 0.0
          %v1035 = vmax.f32 %v1003, 0.0
          %v1036 = vmax.f32 %v1006, 0.0
          %v1037 = vmax.f32 %v1009, 0.0
          %v1038 = vmax.f32 %v1012, 0.0
          %v1039 = vld [vmem:[#allocation3] sm:$0xff]
          %1040 = vxpose.xlu0.b32.start [1/16] %v795, 128
          %1041 = vxpose.xlu0.b32.cont [2/16] %v796, 128
          %1042 = vxpose.xlu0.b32.cont [3/16] %v797, 128
          %1043 = vxpose.xlu0.b32.cont [4/16] %v798, 128
          %1044 = vxpose.xlu0.b32.cont [5/16] %v799, 128
          %1045 = vxpose.xlu0.b32.cont [6/16] %v800, 128
          %1046 = vxpose.xlu0.b32.cont [7/16] %v801, 128
          %1047 = vxpose.xlu0.b32.cont [8/16] %v802, 128
          %1048 = vxpose.xlu0.b32.cont [9/16] %v803, 128
          %1049 = vxpose.xlu0.b32.cont [10/16] %v804, 128
          %1050 = vxpose.xlu0.b32.cont [11/16] %v805, 128
          %1051 = vxpose.xlu0.b32.cont [12/16] %v806, 128
          %1052 = vxpose.xlu0.b32.cont [13/16] %v807, 128
          %1053 = vxpose.xlu0.b32.cont [14/16] %v808, 128
          %1054 = vxpose.xlu0.b32.cont [15/16] %v809, 128
          %1055 = vxpose.xlu0.b32.end [16/16] %v810, 128
          %v1056 = vpop.trf.xlu0
          %v1057 = vpop.trf.xlu0
          %v1058 = vpop.trf.xlu0
          %v1059 = vpop.trf.xlu0
          %v1060 = vpop.trf.xlu0
          %v1061 = vpop.trf.xlu0
          %v1062 = vpop.trf.xlu0
          %v1063 = vpop.trf.xlu0
          %v1064 = vpop.trf.xlu0
          %v1065 = vpop.trf.xlu0
          %v1066 = vpop.trf.xlu0
          %v1067 = vpop.trf.xlu0
          %v1068 = vpop.trf.xlu0
          %v1069 = vpop.trf.xlu0
          %v1070 = vpop.trf.xlu0
          %v1071 = vpop.trf.xlu0
          %1072 = vxpose.xlu0.b32.start [1/16] %v811, 128
          %1073 = vxpose.xlu0.b32.cont [2/16] %v812, 128
          %1074 = vxpose.xlu0.b32.cont [3/16] %v813, 128
          %1075 = vxpose.xlu0.b32.cont [4/16] %v814, 128
          %1076 = vxpose.xlu0.b32.cont [5/16] %v815, 128
          %1077 = vxpose.xlu0.b32.cont [6/16] %v816, 128
          %1078 = vxpose.xlu0.b32.cont [7/16] %v817, 128
          %1079 = vxpose.xlu0.b32.cont [8/16] %v818, 128
          %1080 = vxpose.xlu0.b32.cont [9/16] %v819, 128
          %1081 = vxpose.xlu0.b32.cont [10/16] 0.0, 128
          %1082 = vxpose.xlu0.b32.cont [11/16] 0.0, 128
          %1083 = vxpose.xlu0.b32.cont [12/16] 0.0, 128
          %1084 = vxpose.xlu0.b32.cont [13/16] 0.0, 128
          %1085 = vxpose.xlu0.b32.cont [14/16] 0.0, 128
          %1086 = vxpose.xlu0.b32.cont [15/16] 0.0, 128
          %1087 = vxpose.xlu0.b32.end [16/16] 0.0, 128
          %v1088 = vpop.trf.xlu0
          %v1089 = vpop.trf.xlu0
          %v1090 = vpop.trf.xlu0
          %v1091 = vpop.trf.xlu0
          %v1092 = vpop.trf.xlu0
          %v1093 = vpop.trf.xlu0
          %v1094 = vpop.trf.xlu0
          %v1095 = vpop.trf.xlu0
          %v1096 = vpop.trf.xlu0
          %v1097 = vpop.trf.xlu0
          %v1098 = vpop.trf.xlu0
          %v1099 = vpop.trf.xlu0
          %v1100 = vpop.trf.xlu0
          %v1101 = vpop.trf.xlu0
          %v1102 = vpop.trf.xlu0
          %v1103 = vpop.trf.xlu0
          %vm1104 = vcmask 588800
          %v1106 = vsel %vm1104, %v1088, 0
          %1108 = vmatpush.msra.mxu0 %v1029
          %1109 = vmatpush.msra.mxu0 %v1028
          %1110 = vmatpush.msra.mxu0 %v1027
          %1111 = vmatpush.msra.mxu0 %v1026
          %1112 = vmatpush.msra.mxu0 %v1025
          %1113 = vmatpush.msra.mxu0 %v1024
          %1114 = vmatpush.msra.mxu0 %v1023
          %1115 = vmatpush.msra.mxu0 %v1022
          %1116 = vmatpush.msra.mxu0 %v1021
          %1117 = vmatpush.msra.mxu0 %v1020
          %1118 = vmatpush.msra.mxu0 %v1019
          %1119 = vmatpush.msra.mxu0 %v1018
          %1120 = vmatpush.msra.mxu0 %v1017
          %1121 = vmatpush.msra.mxu0 %v1016
          %1122 = vmatpush.msra.mxu0 %v1015
          %1123 = vmatpush.msra.mxu0 %v1014
          %1124 = vmatmul.f32.gmra.mxu0 %v1056
          %v1125 = vpop.f32.mrf.mxu0
          %v1126 = vadd.f32 0.0, %v1125
          %1127 = vdwg.mxu0
          %1128 = vmatpush.msra.mxu0 0.0
          %1129 = vmatpush.msra.mxu0 0.0
          %1130 = vmatpush.msra.mxu0 0.0
          %1131 = vmatpush.msra.mxu0 0.0
          %1132 = vmatpush.msra.mxu0 0.0
          %1133 = vmatpush.msra.mxu0 0.0
          %1134 = vmatpush.msra.mxu0 0.0
          %1135 = vmatpush.msra.mxu0 %v1038
          %1136 = vmatpush.msra.mxu0 %v1037
          %1137 = vmatpush.msra.mxu0 %v1036
          %1138 = vmatpush.msra.mxu0 %v1035
          %1139 = vmatpush.msra.mxu0 %v1034
          %1140 = vmatpush.msra.mxu0 %v1033
          %1141 = vmatpush.msra.mxu0 %v1032
          %1142 = vmatpush.msra.mxu0 %v1031
          %1143 = vmatpush.msra.mxu0 %v1030
          %1144 = vmatmul.f32.gmra.mxu0 %v1106
          %v1145 = vpop.f32.mrf.mxu0
          %v1146 = vadd.f32 %v1126, %v1145
          %1147 = vdwg.mxu0
          %v1148 = vadd.f32 %v1039, %v1146
          %vm1149 = vcmask 261120
          %1150 = vst.msk [vmem:[#allocation3] sm:$0xff] %vm1149, %v1148
        $region60: #{tpu_custom_call.1} parent=47 // pred_fallthru
          _
        // Predicated region
        $region61: #{tpu_custom_call.1} parent=47 // pred_check
          %p1151 = pneg %p561
        $region62: #{tpu_custom_call.1} parent=47 // pred_check_branch
          %1153 = sbr.rel (%p1151) target = $region64
        $region63: #{tpu_custom_call.1} parent=47 // pred_region
          %v1154 = vld [vmem:[#allocation4] sm:$0xff]
          %v1155 = vld [vmem:[#allocation3] sm:$0xff]
          %v1156 = vld [vmem:[%s559] sm:$0xff]
          %v1157 = vld [vmem:[%s559 + $0x8] sm:$0xff]
          %v1158 = vld [vmem:[%s559 + $0x10] sm:$0xff]
          %v1159 = vld [vmem:[%s559 + $0x18] sm:$0xff]
          %vm1160 = vcmask 261120
          %v1162 = vsel %vm1160, %v1155, 0
          %1164 = vmatpush.msra.mxu0 0.0
          %1165 = vmatpush.msra.mxu0 0.0
          %1166 = vmatpush.msra.mxu0 0.0
          %1167 = vmatpush.msra.mxu0 0.0
          %1168 = vmatpush.msra.mxu0 0.0
          %1169 = vmatpush.msra.mxu0 0.0
          %1170 = vmatpush.msra.mxu0 0.0
          %1171 = vmatpush.msra.mxu0 0.0
          %1172 = vmatpush.msra.mxu0 0.0
          %1173 = vmatpush.msra.mxu0 0.0
          %1174 = vmatpush.msra.mxu0 0.0
          %1175 = vmatpush.msra.mxu0 0.0
          %1176 = vmatpush.msra.mxu0 %v1159
          %1177 = vmatpush.msra.mxu0 %v1158
          %1178 = vmatpush.msra.mxu0 %v1157
          %1179 = vmatpush.msra.mxu0 %v1156
          %1180 = vmatmul.f32.gmra.mxu0 %v1162
          %v1181 = vpop.f32.mrf.mxu0
          %v1182 = vadd.f32 0.0, %v1181
          %1183 = vdwg.mxu0
          %v1184 = vadd.f32 %v1154, %v1182
          %1185 = vst [vmem:[#allocation4] sm:$0xff] %v1184
        $region64: #{tpu_custom_call.1} parent=47 // pred_fallthru
          _
        %p1186 = scmp.eq.s32.totalorder %s42, 1
        %p1187 = pnand %p1186, %p561
        %p1188 = pneg %p1187
        // Predicated region
        $region65: #{tpu_custom_call.1} parent=47 // pred_check
          _
        $region66: #{tpu_custom_call.1} parent=47 // pred_check_branch
          %1190 = sbr.rel (%p1187) target = $region68
        $region67: #{tpu_custom_call.1} parent=47 // pred_region
          %v1191 = vld [vmem:[#allocation4] sm:$0xff]
          %v1192 = vmax.f32 %v1191, 0.0
          %1193 = vst [vmem:[%s485] sm:$0xff] %v1192
        $region68: #{tpu_custom_call.1} parent=47 // pred_fallthru
          _
        %s1194 = sand.u32 %s279, 1
        %s1195 = scalar_lea.sflag [#allocation9], %s1194
        %s1196 = sand.u32 %s279, 1
        %s1197 = smul.addr %s1196, 8
        %s1198 = scalar_lea.vmem [#allocation8], %s1197
        // Predicated region
        $region69: #{tpu_custom_call.1} parent=47 // pred_check
          %p1199 = pneg %p289
        $region70: #{tpu_custom_call.1} parent=47 // pred_check_branch
          %1201 = sbr.rel (%p1199) target = $region72
        $region71: #{tpu_custom_call.1} parent=47 // pred_region
          %1203 = vsyncadd %s1195, 0
          %s1204 = smul.addr %s41, 8
          %s1205 = scalar_lea.hbm %s9, %s1204
          %s1207 = sshll.u32 %s1198, 4
          %s1208 = int_to_ptr.vmem [resolvable:$true] %s1207
          %s1209 = sshll.u32 %s1205, 4
          %s1210 = int_to_ptr.hbm [resolvable:$true] %s1209
          %1212 = dma.vmem_to_hbm [thread:$0]  %s1208, 128, %s1210, %s1195
        $region72: #{tpu_custom_call.1} parent=47 // pred_fallthru
          _
      $region48: #{tpu_custom_call.1} parent=5 // pred_fallthru
        _
      %p1213 = scmp.le.s32.totalorder 2, %s31
      // Predicated region
      $region73: #{tpu_custom_call.1} parent=5 // pred_check
        %p1214 = pneg %p1213
      $region74: #{tpu_custom_call.1} parent=5 // pred_check_branch
        %1216 = sbr.rel (%p1214) target = $region76
      $region75: #{tpu_custom_call.1} parent=5 // pred_region
        %s1217 = ssub.s32 %s31, 2
        // Predicated region
        $region77: #{tpu_custom_call.1} parent=75 // pred_check
          %p1218 = pneg %p295
        $region78: #{tpu_custom_call.1} parent=75 // pred_check_branch
          %1220 = sbr.rel (%p1218) target = $region80
        $region79: #{tpu_custom_call.1} parent=75 // pred_region
          %s1221 = sand.u32 %s280, 1
          %s1222 = scalar_lea.sflag [#allocation9], %s1221
          %s1223 = sand.u32 %s280, 1
          %s1224 = smul.addr %s1223, 8
          %s1225 = scalar_lea.vmem [#allocation8], %s1224
          %1227 = dma.done %s1222, 128
        $region80: #{tpu_custom_call.1} parent=75 // pred_fallthru
          _
      $region76: #{tpu_custom_call.1} parent=5 // pred_fallthru
        _
    $region6: #{tpu_custom_call.1} parent=1 // loop_footer
      %s35 = sadd.s32 1, %s31
    $region7: #{tpu_custom_call.1} parent=1 // loop_footer_branch
      %30 = sbr.rel target = $region3
    $region8: #{tpu_custom_call.1} parent=1 // loop_exit
      _
    %1228 = vsyncpa [#allocation9], 1
    %s1229 = scalar_lea.sflag [#allocation9], 1
    %1230 = vsyncpa %s1229, 1

</llo_original>
